<compile_context>
chip_gen: v6e
topology: v6e:2x2x1
jax: 0.10.0
libtpu: 0.0.40
codegen_flags: <defaults>
</compile_context>

<pallas_src>
import functools

import jax
import jax.numpy as jnp
from jax.experimental import pallas as pl
from jax.experimental.pallas import tpu as pltpu


def autoencoder_kernel(x_ref,
                       w1_ref, b1_ref,   # encoder layer 1: D -> H
                       w2_ref, b2_ref,   # encoder layer 2: H -> Lpad
                       w3_ref, b3_ref,   # decoder layer 1: Lpad -> H
                       w4_ref, b4_ref,   # decoder layer 2: H -> D
                       out_ref):
    x = x_ref[...]                                                      # [TM, D] bf16

    # ----- encoder -----
    h1 = jnp.dot(x, w1_ref[...], preferred_element_type=jnp.float32)   # [TM, H] f32 (MXU)
    h1 = jnp.maximum(h1 + b1_ref[...], 0.0)                            # bias + ReLU (VPU)
    z = jnp.dot(h1.astype(jnp.bfloat16), w2_ref[...],
                preferred_element_type=jnp.float32)                    # [TM, Lpad]
    z = z + b2_ref[...]                                                 # latent (padded lanes stay exactly 0)

    # ----- decoder -----
    h2 = jnp.dot(z.astype(jnp.bfloat16), w3_ref[...],
                 preferred_element_type=jnp.float32)                   # [TM, H]
    h2 = jnp.maximum(h2 + b3_ref[...], 0.0)                            # bias + ReLU
    y = jnp.dot(h2.astype(jnp.bfloat16), w4_ref[...],
                preferred_element_type=jnp.float32)                    # [TM, D]
    y = y + b4_ref[...]

    out_ref[...] = jax.nn.sigmoid(y)                                   # Sigmoid (EUP)


def prepare_params(params_f32, lat_pad=128):
    """Cast weights to bf16 and zero-pad the latent dim to `lat_pad` lanes.

    Padding is numerically exact: the extra w2 columns / b2 entries / w3 rows
    are zero, so the padded latent lanes are 0 and contribute nothing.
    """
    w1, b1, w2, b2, w3, b3, w4, b4 = params_f32
    _, L = w2.shape
    pad = lat_pad - L
    w2p = jnp.pad(w2, ((0, 0), (0, pad)))
    b2p = jnp.pad(b2, ((0, 0), (0, pad)))
    w3p = jnp.pad(w3, ((0, pad), (0, 0)))
    return (w1.astype(jnp.bfloat16), b1.astype(jnp.float32),
            w2p.astype(jnp.bfloat16), b2p.astype(jnp.float32),
            w3p.astype(jnp.bfloat16), b3.astype(jnp.float32),
            w4.astype(jnp.bfloat16), b4.astype(jnp.float32))


@functools.partial(jax.jit, static_argnames=("tm",))
def autoencoder_forward(x_nchw, kparams, *, tm=256):
    """x_nchw: [B, C, H, W] float32. Returns reconstruction [B, C, H, W] f32."""
    B, C, H, W = x_nchw.shape
    D = C * H * W
    x = x_nchw.reshape(B, D).astype(jnp.bfloat16)      # flatten + bf16 for MXU

    (w1, b1, w2, b2, w3, b3, w4, b4) = kparams
    Hd = w1.shape[1]
    Lp = w2.shape[1]

    # Batch tile: big enough to amortize per-step overhead, padded to a
    # sublane-friendly multiple of 8 when the batch is tiny.
    tm = min(tm, max(B, 8))
    n_tiles = pl.cdiv(B, tm)
    B_pad = n_tiles * tm
    if B_pad != B:
        x = jnp.pad(x, ((0, B_pad - B), (0, 0)))

    # x / out march over the batch; weights are constant (stay resident in VMEM).
    def moving(shape):
        return pl.BlockSpec(shape, lambda i: (i, 0))

    def resident(shape):
        return pl.BlockSpec(shape, lambda i: (0, 0))

    out_flat = pl.pallas_call(
        autoencoder_kernel,
        out_shape=jax.ShapeDtypeStruct((B_pad, D), jnp.float32),
        grid=(n_tiles,),
        in_specs=[
            moving((tm, D)),
            resident((D, Hd)), resident((1, Hd)),
            resident((Hd, Lp)), resident((1, Lp)),
            resident((Lp, Hd)), resident((1, Hd)),
            resident((Hd, D)), resident((1, D)),
        ],
        out_specs=moving((tm, D)),
        compiler_params=pltpu.CompilerParams(
            dimension_semantics=("parallel",),      # 2x on v7x dual-TC; no-op on v5e/v6e
            vmem_limit_bytes=64 << 20,
        ),
    )(x, w1, b1, w2, b2, w3, b3, w4, b4)

    return out_flat[:B].reshape(B, C, H, W)


def init_params(key, D, Hd, L):
    """Deterministic f32 parameter init (weights stored [in, out])."""
    ks = jax.random.split(key, 8)

    def lin(kw, kb, fan_in, fan_out):
        # uniform(-1/sqrt(fan_in), 1/sqrt(fan_in)) like PyTorch Linear default
        bound = 1.0 / jnp.sqrt(fan_in)
        w = jax.random.uniform(kw, (fan_in, fan_out), jnp.float32, -bound, bound)
        b = jax.random.uniform(kb, (1, fan_out), jnp.float32, -bound, bound)
        return w, b

    w1, b1 = lin(ks[0], ks[1], D, Hd)
    w2, b2 = lin(ks[2], ks[3], Hd, L)
    w3, b3 = lin(ks[4], ks[5], L, Hd)
    w4, b4 = lin(ks[6], ks[7], Hd, D)
    return (w1, b1, w2, b2, w3, b3, w4, b4)


if __name__ == "__main__":
    key = jax.random.PRNGKey(0)
    kx, kp = jax.random.split(key)

    B, C, Himg, Wimg = 256, 1, 16, 16   # small batch; grid=(2,) so the pipeline engages
    D = C * Himg * Wimg                 # 256 (lane-dense: multiple of 128)
    Hd = 128                            # hidden width
    L = 32                              # latent dim (padded to 128 in-kernel)
    TM = 128                            # batch tile

    x = jax.random.normal(kx, (B, C, Himg, Wimg), jnp.float32)
    params = init_params(kp, D, Hd, L)
    kparams = prepare_params(params, lat_pad=128)

    out = autoencoder_forward(x, kparams, tm=TM)
    out = jax.block_until_ready(out)

    # Reference in plain JAX with the identical bf16-operand / f32-accumulate
    # matmul recipe (un-padded L=32 path; padding is numerically exact).
    w1, b1, w2, b2, w3, b3, w4, b4 = params
    xf = x.reshape(B, D).astype(jnp.bfloat16)
    h1 = jnp.maximum(
        jnp.dot(xf, w1.astype(jnp.bfloat16), preferred_element_type=jnp.float32) + b1, 0.0)
    z = jnp.dot(h1.astype(jnp.bfloat16), w2.astype(jnp.bfloat16),
                preferred_element_type=jnp.float32) + b2
    h2 = jnp.maximum(
        jnp.dot(z.astype(jnp.bfloat16), w3.astype(jnp.bfloat16),
                preferred_element_type=jnp.float32) + b3, 0.0)
    y = jnp.dot(h2.astype(jnp.bfloat16), w4.astype(jnp.bfloat16),
                preferred_element_type=jnp.float32) + b4
    ref = jax.nn.sigmoid(y).reshape(B, C, Himg, Wimg)

    assert out.shape == (B, C, Himg, Wimg)
    assert jnp.allclose(out, ref, atol=5e-3, rtol=0.0), \
        f"max abs diff = {jnp.max(jnp.abs(out - ref))}"

    print("KERNEL_OK")
</pallas_src>

<mosaic_0001>
module attributes {stable_mosaic.version = 11 : i64} {
  func.func @autoencoder_kernel(%arg0: i32, %arg1: memref<128x256xbf16, #tpu.memory_space<vmem>>, %arg2: memref<256x128xbf16, #tpu.memory_space<vmem>>, %arg3: memref<1x128xf32, #tpu.memory_space<vmem>>, %arg4: memref<128x128xbf16, #tpu.memory_space<vmem>>, %arg5: memref<1x128xf32, #tpu.memory_space<vmem>>, %arg6: memref<128x128xbf16, #tpu.memory_space<vmem>>, %arg7: memref<1x128xf32, #tpu.memory_space<vmem>>, %arg8: memref<128x256xbf16, #tpu.memory_space<vmem>>, %arg9: memref<1x256xf32, #tpu.memory_space<vmem>>, %arg10: memref<128x256xf32, #tpu.memory_space<vmem>>) attributes {dimension_semantics = [#tpu.dimension_semantics<parallel>], iteration_bounds = array<i64: 2>, scalar_prefetch = 0 : i64, scratch_operands = 0 : i64, tpu.core_type = #tpu.core_type<tc>, window_params = [{transform_indices = @transform_0, window_bounds = array<i64: 128, 256>}, {pipeline_mode = #tpu.pipeline_mode<synchronous>, transform_indices = @transform_1, window_bounds = array<i64: 256, 128>}, {pipeline_mode = #tpu.pipeline_mode<synchronous>, transform_indices = @transform_2, window_bounds = array<i64: 1, 128>}, {pipeline_mode = #tpu.pipeline_mode<synchronous>, transform_indices = @transform_3, window_bounds = array<i64: 128, 128>}, {pipeline_mode = #tpu.pipeline_mode<synchronous>, transform_indices = @transform_4, window_bounds = array<i64: 1, 128>}, {pipeline_mode = #tpu.pipeline_mode<synchronous>, transform_indices = @transform_5, window_bounds = array<i64: 128, 128>}, {pipeline_mode = #tpu.pipeline_mode<synchronous>, transform_indices = @transform_6, window_bounds = array<i64: 1, 128>}, {pipeline_mode = #tpu.pipeline_mode<synchronous>, transform_indices = @transform_7, window_bounds = array<i64: 128, 256>}, {pipeline_mode = #tpu.pipeline_mode<synchronous>, transform_indices = @transform_8, window_bounds = array<i64: 1, 256>}, {transform_indices = @transform_9, window_bounds = array<i64: 128, 256>}]} {
    %c0 = arith.constant 0 : index
    %c0_0 = arith.constant 0 : index
    %0 = vector.load %arg1[%c0, %c0_0] : memref<128x256xbf16, #tpu.memory_space<vmem>>, vector<128x256xbf16>
    %c0_1 = arith.constant 0 : index
    %c0_2 = arith.constant 0 : index
    %1 = vector.load %arg2[%c0_1, %c0_2] : memref<256x128xbf16, #tpu.memory_space<vmem>>, vector<256x128xbf16>
    %cst = arith.constant dense<0.000000e+00> : vector<128x128xf32>
    %2 = tpu.matmul %0, %1, %cst {dimension_numbers = #tpu.dot_dimension_numbers<[1], [0], [0], [1], [0, 0, 1, 1], [], []>} : vector<128x256xbf16>, vector<256x128xbf16>, vector<128x128xf32> -> vector<128x128xf32>
    %c0_3 = arith.constant 0 : index
    %c0_4 = arith.constant 0 : index
    %3 = vector.load %arg3[%c0_3, %c0_4] : memref<1x128xf32, #tpu.memory_space<vmem>>, vector<1x128xf32>
    %4 = vector.broadcast %3 : vector<1x128xf32> to vector<128x128xf32>
    %5 = arith.addf %2, %4 : vector<128x128xf32>
    %cst_5 = arith.constant 0.000000e+00 : f32
    %6 = vector.broadcast %cst_5 : f32 to vector<128x128xf32>
    %7 = arith.maximumf %5, %6 : vector<128x128xf32>
    %8 = arith.truncf %7 : vector<128x128xf32> to vector<128x128xbf16>
    %c0_6 = arith.constant 0 : index
    %c0_7 = arith.constant 0 : index
    %9 = vector.load %arg4[%c0_6, %c0_7] : memref<128x128xbf16, #tpu.memory_space<vmem>>, vector<128x128xbf16>
    %cst_8 = arith.constant dense<0.000000e+00> : vector<128x128xf32>
    %10 = tpu.matmul %8, %9, %cst_8 {dimension_numbers = #tpu.dot_dimension_numbers<[1], [0], [0], [1], [0, 0, 1, 1], [], []>} : vector<128x128xbf16>, vector<128x128xbf16>, vector<128x128xf32> -> vector<128x128xf32>
    %c0_9 = arith.constant 0 : index
    %c0_10 = arith.constant 0 : index
    %11 = vector.load %arg5[%c0_9, %c0_10] : memref<1x128xf32, #tpu.memory_space<vmem>>, vector<1x128xf32>
    %12 = vector.broadcast %11 : vector<1x128xf32> to vector<128x128xf32>
    %13 = arith.addf %10, %12 : vector<128x128xf32>
    %14 = arith.truncf %13 : vector<128x128xf32> to vector<128x128xbf16>
    %c0_11 = arith.constant 0 : index
    %c0_12 = arith.constant 0 : index
    %15 = vector.load %arg6[%c0_11, %c0_12] : memref<128x128xbf16, #tpu.memory_space<vmem>>, vector<128x128xbf16>
    %cst_13 = arith.constant dense<0.000000e+00> : vector<128x128xf32>
    %16 = tpu.matmul %14, %15, %cst_13 {dimension_numbers = #tpu.dot_dimension_numbers<[1], [0], [0], [1], [0, 0, 1, 1], [], []>} : vector<128x128xbf16>, vector<128x128xbf16>, vector<128x128xf32> -> vector<128x128xf32>
    %c0_14 = arith.constant 0 : index
    %c0_15 = arith.constant 0 : index
    %17 = vector.load %arg7[%c0_14, %c0_15] : memref<1x128xf32, #tpu.memory_space<vmem>>, vector<1x128xf32>
    %18 = vector.broadcast %17 : vector<1x128xf32> to vector<128x128xf32>
    %19 = arith.addf %16, %18 : vector<128x128xf32>
    %cst_16 = arith.constant 0.000000e+00 : f32
    %20 = vector.broadcast %cst_16 : f32 to vector<128x128xf32>
    %21 = arith.maximumf %19, %20 : vector<128x128xf32>
    %22 = arith.truncf %21 : vector<128x128xf32> to vector<128x128xbf16>
    %c0_17 = arith.constant 0 : index
    %c0_18 = arith.constant 0 : index
    %23 = vector.load %arg8[%c0_17, %c0_18] : memref<128x256xbf16, #tpu.memory_space<vmem>>, vector<128x256xbf16>
    %cst_19 = arith.constant dense<0.000000e+00> : vector<128x256xf32>
    %24 = tpu.matmul %22, %23, %cst_19 {dimension_numbers = #tpu.dot_dimension_numbers<[1], [0], [0], [1], [0, 0, 1, 1], [], []>} : vector<128x128xbf16>, vector<128x256xbf16>, vector<128x256xf32> -> vector<128x256xf32>
    %c0_20 = arith.constant 0 : index
    %c0_21 = arith.constant 0 : index
    %25 = vector.load %arg9[%c0_20, %c0_21] : memref<1x256xf32, #tpu.memory_space<vmem>>, vector<1x256xf32>
    %26 = vector.broadcast %25 : vector<1x256xf32> to vector<128x256xf32>
    %27 = arith.addf %24, %26 : vector<128x256xf32>
    %28 = arith.negf %27 : vector<128x256xf32>
    %29 = math.exp %28 : vector<128x256xf32>
    %cst_22 = arith.constant 1.000000e+00 : f32
    %30 = vector.broadcast %cst_22 : f32 to vector<128x256xf32>
    %31 = arith.addf %30, %29 : vector<128x256xf32>
    %32 = arith.divf %30, %31 : vector<128x256xf32>
    %c0_23 = arith.constant 0 : index
    %c0_24 = arith.constant 0 : index
    %33 = vector.load %arg10[%c0_23, %c0_24] : memref<128x256xf32, #tpu.memory_space<vmem>>, vector<128x256xf32>
    tpu.vector_store %arg10[%c0_23, %c0_24], %32 {strides = array<i32>} : memref<128x256xf32, #tpu.memory_space<vmem>>, vector<128x256xf32>,
    return
  }
  func.func @transform_0(%arg0: i32) -> (i32, i32) {
    %c0_i32 = arith.constant 0 : i32
    %c0_i32_0 = arith.constant 0 : i32
    return %arg0, %c0_i32 : i32, i32
  }
  func.func @transform_1(%arg0: i32) -> (i32, i32) {
    %c0_i32 = arith.constant 0 : i32
    %c0_i32_0 = arith.constant 0 : i32
    %c0_i32_1 = arith.constant 0 : i32
    return %c0_i32, %c0_i32_0 : i32, i32
  }
  func.func @transform_2(%arg0: i32) -> (i32, i32) {
    %c0_i32 = arith.constant 0 : i32
    %c0_i32_0 = arith.constant 0 : i32
    %c0_i32_1 = arith.constant 0 : i32
    return %c0_i32, %c0_i32_0 : i32, i32
  }
  func.func @transform_3(%arg0: i32) -> (i32, i32) {
    %c0_i32 = arith.constant 0 : i32
    %c0_i32_0 = arith.constant 0 : i32
    %c0_i32_1 = arith.constant 0 : i32
    return %c0_i32, %c0_i32_0 : i32, i32
  }
  func.func @transform_4(%arg0: i32) -> (i32, i32) {
    %c0_i32 = arith.constant 0 : i32
    %c0_i32_0 = arith.constant 0 : i32
    %c0_i32_1 = arith.constant 0 : i32
    return %c0_i32, %c0_i32_0 : i32, i32
  }
  func.func @transform_5(%arg0: i32) -> (i32, i32) {
    %c0_i32 = arith.constant 0 : i32
    %c0_i32_0 = arith.constant 0 : i32
    %c0_i32_1 = arith.constant 0 : i32
    return %c0_i32, %c0_i32_0 : i32, i32
  }
  func.func @transform_6(%arg0: i32) -> (i32, i32) {
    %c0_i32 = arith.constant 0 : i32
    %c0_i32_0 = arith.constant 0 : i32
    %c0_i32_1 = arith.constant 0 : i32
    return %c0_i32, %c0_i32_0 : i32, i32
  }
  func.func @transform_7(%arg0: i32) -> (i32, i32) {
    %c0_i32 = arith.constant 0 : i32
    %c0_i32_0 = arith.constant 0 : i32
    %c0_i32_1 = arith.constant 0 : i32
    return %c0_i32, %c0_i32_0 : i32, i32
  }
  func.func @transform_8(%arg0: i32) -> (i32, i32) {
    %c0_i32 = arith.constant 0 : i32
    %c0_i32_0 = arith.constant 0 : i32
    %c0_i32_1 = arith.constant 0 : i32
    return %c0_i32, %c0_i32_0 : i32, i32
  }
  func.func @transform_9(%arg0: i32) -> (i32, i32) {
    %c0_i32 = arith.constant 0 : i32
    %c0_i32_0 = arith.constant 0 : i32
    return %arg0, %c0_i32 : i32, i32
  }
}

</mosaic_0001>

<llo_original>
// kernel: autoencoder_forward.1
$region0: #{autoencoder_forward.1}
  #allocation0 [shape = 'u32[]', space=smem, size = 0x4, offset = 0x4, fixed_abs, tag = 'smem constant byte address 0x4 - core index']
  #allocation1 [shape = 'u32[144,128]{1,0:T(1,128)}', space=vmem, size = 0x12000, scoped, tag = 'internal scratch']
  %s0 = inlined_call_operand.vmem [shape: bf16[256,256], index: 0, kind: input, shape index: {}]
  %s1 = inlined_call_operand.vmem [shape: bf16[256,128], index: 1, kind: input, shape index: {}]
  %s2 = inlined_call_operand.vmem [shape: f32[1,128], index: 2, kind: input, shape index: {}]
  %s3 = inlined_call_operand.vmem [shape: bf16[128,128], index: 3, kind: input, shape index: {}]
  %s4 = inlined_call_operand.vmem [shape: f32[1,128], index: 4, kind: input, shape index: {}]
  %s5 = inlined_call_operand.vmem [shape: bf16[128,128], index: 5, kind: input, shape index: {}]
  %s6 = inlined_call_operand.vmem [shape: f32[1,128], index: 6, kind: input, shape index: {}]
  %s7 = inlined_call_operand.vmem [shape: bf16[128,256], index: 7, kind: input, shape index: {}]
  %s8 = inlined_call_operand.vmem [shape: f32[1,256], index: 8, kind: input, shape index: {}]
  %s9 = inlined_call_operand.vmem [shape: f32[256,256], index: 9, kind: output, shape index: {}]
  %s10 = sld [smem:[#allocation0]]
  $region69: #{autoencoder_forward.1} parent=0
    _
  %s12 = ssub.s32 1, %s10
  %s13 = scalar_select 0, %s12, %s10
  loop: start=0, step=1, limit=4
  $region2: #{autoencoder_forward.1} parent=0 // loop_pre_header
    _
  $region3: #{autoencoder_forward.1} parent=0 // loop_header
    %s15 = sphi 0, %s19
    %p16 = scmp.ge.s32.totalorder %s15, 4
    %s25 = sphi 0, %s27
    %s28 = sphi 0, %s25
    %s29 = sphi 0, %s28
    %s45 = sphi 0, %s29
    %s49 = sphi 0, %s49
    %s51 = sphi 0, %s49
    %s52 = sphi 0, %s51
    %s66 = sphi 0, %s52
    %s70 = sphi 0, %s70
    %s72 = sphi 0, %s70
    %s73 = sphi 0, %s72
    %s87 = sphi 0, %s73
    %s91 = sphi 0, %s91
    %s93 = sphi 0, %s91
    %s94 = sphi 0, %s93
    %s108 = sphi 0, %s94
    %s112 = sphi 0, %s112
    %s114 = sphi 0, %s112
    %s115 = sphi 0, %s114
    %s129 = sphi 0, %s115
    %s133 = sphi 0, %s133
    %s135 = sphi 0, %s133
    %s136 = sphi 0, %s135
    %s150 = sphi 0, %s136
    %s154 = sphi 0, %s154
    %s156 = sphi 0, %s154
    %s157 = sphi 0, %s156
    %s171 = sphi 0, %s157
    %s175 = sphi 0, %s175
    %s177 = sphi 0, %s175
    %s178 = sphi 0, %s177
    %s192 = sphi 0, %s178
    %s196 = sphi 0, %s196
    %s198 = sphi 0, %s196
    %s199 = sphi 0, %s198
    %s213 = sphi 0, %s199
    %s219 = sphi 0, %s221
    %s222 = sphi 0, %s219
    %s223 = sphi 0, %s222
    %s239 = sphi 0, %s223
  $region4: #{autoencoder_forward.1} parent=0 // loop_header_branch
    %18 = sbr.rel (%p16) target = $region8
  $region5: #{autoencoder_forward.1} parent=0 // loop_body
    %s20 = ssub.s32 %s15, 1
    %s21 = ssub.s32 %s15, 2
    %s22 = sadd.s32 %s15, 1
    %s23 = ssub.s32 %s15, %s22
    %p24 = scmp.eq.s32.totalorder %s23, 0
    %s26 = sadd.s32 %s25, 1
    %s27 = scalar_select %p24, %s25, %s26
    %p30 = pneg %p24
    %p31 = scmp.eq.s32.totalorder %s15, 1
    %p32 = por %p30, %p31
    %p33 = scmp.ne.s32.totalorder %s25, %s28
    %p34 = scmp.eq.s32.totalorder %s15, 0
    %p35 = por %p33, %p34
    %p36 = scmp.ne.s32.totalorder %s25, %s28
    %p37 = scmp.eq.s32.totalorder %s20, 1
    %p38 = por %p36, %p37
    %p39 = scmp.ne.s32.totalorder %s28, %s29
    %p40 = scmp.eq.s32.totalorder %s20, 0
    %p41 = por %p39, %p40
    %p42 = scmp.ne.s32.totalorder %s28, %s29
    %p43 = scmp.eq.s32.totalorder %s21, 1
    %p44 = por %p42, %p43
    %p46 = scmp.ne.s32.totalorder %s29, %s45
    %p47 = scmp.eq.s32.totalorder %s21, 0
    %p48 = por %p46, %p47
    %s50 = sadd.s32 %s49, 1
    %p53 = scmp.eq.s32.totalorder %s15, 1
    %p54 = scmp.ne.s32.totalorder %s49, %s51
    %p55 = scmp.eq.s32.totalorder %s15, 0
    %p56 = por %p54, %p55
    %p57 = scmp.ne.s32.totalorder %s49, %s51
    %p58 = scmp.eq.s32.totalorder %s20, 1
    %p59 = por %p57, %p58
    %p60 = scmp.ne.s32.totalorder %s51, %s52
    %p61 = scmp.eq.s32.totalorder %s20, 0
    %p62 = por %p60, %p61
    %p63 = scmp.ne.s32.totalorder %s51, %s52
    %p64 = scmp.eq.s32.totalorder %s21, 1
    %p65 = por %p63, %p64
    %p67 = scmp.ne.s32.totalorder %s52, %s66
    %p68 = scmp.eq.s32.totalorder %s21, 0
    %p69 = por %p67, %p68
    %s71 = sadd.s32 %s70, 1
    %p74 = scmp.eq.s32.totalorder %s15, 1
    %p75 = scmp.ne.s32.totalorder %s70, %s72
    %p76 = scmp.eq.s32.totalorder %s15, 0
    %p77 = por %p75, %p76
    %p78 = scmp.ne.s32.totalorder %s70, %s72
    %p79 = scmp.eq.s32.totalorder %s20, 1
    %p80 = por %p78, %p79
    %p81 = scmp.ne.s32.totalorder %s72, %s73
    %p82 = scmp.eq.s32.totalorder %s20, 0
    %p83 = por %p81, %p82
    %p84 = scmp.ne.s32.totalorder %s72, %s73
    %p85 = scmp.eq.s32.totalorder %s21, 1
    %p86 = por %p84, %p85
    %p88 = scmp.ne.s32.totalorder %s73, %s87
    %p89 = scmp.eq.s32.totalorder %s21, 0
    %p90 = por %p88, %p89
    %s92 = sadd.s32 %s91, 1
    %p95 = scmp.eq.s32.totalorder %s15, 1
    %p96 = scmp.ne.s32.totalorder %s91, %s93
    %p97 = scmp.eq.s32.totalorder %s15, 0
    %p98 = por %p96, %p97
    %p99 = scmp.ne.s32.totalorder %s91, %s93
    %p100 = scmp.eq.s32.totalorder %s20, 1
    %p101 = por %p99, %p100
    %p102 = scmp.ne.s32.totalorder %s93, %s94
    %p103 = scmp.eq.s32.totalorder %s20, 0
    %p104 = por %p102, %p103
    %p105 = scmp.ne.s32.totalorder %s93, %s94
    %p106 = scmp.eq.s32.totalorder %s21, 1
    %p107 = por %p105, %p106
    %p109 = scmp.ne.s32.totalorder %s94, %s108
    %p110 = scmp.eq.s32.totalorder %s21, 0
    %p111 = por %p109, %p110
    %s113 = sadd.s32 %s112, 1
    %p116 = scmp.eq.s32.totalorder %s15, 1
    %p117 = scmp.ne.s32.totalorder %s112, %s114
    %p118 = scmp.eq.s32.totalorder %s15, 0
    %p119 = por %p117, %p118
    %p120 = scmp.ne.s32.totalorder %s112, %s114
    %p121 = scmp.eq.s32.totalorder %s20, 1
    %p122 = por %p120, %p121
    %p123 = scmp.ne.s32.totalorder %s114, %s115
    %p124 = scmp.eq.s32.totalorder %s20, 0
    %p125 = por %p123, %p124
    %p126 = scmp.ne.s32.totalorder %s114, %s115
    %p127 = scmp.eq.s32.totalorder %s21, 1
    %p128 = por %p126, %p127
    %p130 = scmp.ne.s32.totalorder %s115, %s129
    %p131 = scmp.eq.s32.totalorder %s21, 0
    %p132 = por %p130, %p131
    %s134 = sadd.s32 %s133, 1
    %p137 = scmp.eq.s32.totalorder %s15, 1
    %p138 = scmp.ne.s32.totalorder %s133, %s135
    %p139 = scmp.eq.s32.totalorder %s15, 0
    %p140 = por %p138, %p139
    %p141 = scmp.ne.s32.totalorder %s133, %s135
    %p142 = scmp.eq.s32.totalorder %s20, 1
    %p143 = por %p141, %p142
    %p144 = scmp.ne.s32.totalorder %s135, %s136
    %p145 = scmp.eq.s32.totalorder %s20, 0
    %p146 = por %p144, %p145
    %p147 = scmp.ne.s32.totalorder %s135, %s136
    %p148 = scmp.eq.s32.totalorder %s21, 1
    %p149 = por %p147, %p148
    %p151 = scmp.ne.s32.totalorder %s136, %s150
    %p152 = scmp.eq.s32.totalorder %s21, 0
    %p153 = por %p151, %p152
    %s155 = sadd.s32 %s154, 1
    %p158 = scmp.eq.s32.totalorder %s15, 1
    %p159 = scmp.ne.s32.totalorder %s154, %s156
    %p160 = scmp.eq.s32.totalorder %s15, 0
    %p161 = por %p159, %p160
    %p162 = scmp.ne.s32.totalorder %s154, %s156
    %p163 = scmp.eq.s32.totalorder %s20, 1
    %p164 = por %p162, %p163
    %p165 = scmp.ne.s32.totalorder %s156, %s157
    %p166 = scmp.eq.s32.totalorder %s20, 0
    %p167 = por %p165, %p166
    %p168 = scmp.ne.s32.totalorder %s156, %s157
    %p169 = scmp.eq.s32.totalorder %s21, 1
    %p170 = por %p168, %p169
    %p172 = scmp.ne.s32.totalorder %s157, %s171
    %p173 = scmp.eq.s32.totalorder %s21, 0
    %p174 = por %p172, %p173
    %s176 = sadd.s32 %s175, 1
    %p179 = scmp.eq.s32.totalorder %s15, 1
    %p180 = scmp.ne.s32.totalorder %s175, %s177
    %p181 = scmp.eq.s32.totalorder %s15, 0
    %p182 = por %p180, %p181
    %p183 = scmp.ne.s32.totalorder %s175, %s177
    %p184 = scmp.eq.s32.totalorder %s20, 1
    %p185 = por %p183, %p184
    %p186 = scmp.ne.s32.totalorder %s177, %s178
    %p187 = scmp.eq.s32.totalorder %s20, 0
    %p188 = por %p186, %p187
    %p189 = scmp.ne.s32.totalorder %s177, %s178
    %p190 = scmp.eq.s32.totalorder %s21, 1
    %p191 = por %p189, %p190
    %p193 = scmp.ne.s32.totalorder %s178, %s192
    %p194 = scmp.eq.s32.totalorder %s21, 0
    %p195 = por %p193, %p194
    %s197 = sadd.s32 %s196, 1
    %p200 = scmp.eq.s32.totalorder %s15, 1
    %p201 = scmp.ne.s32.totalorder %s196, %s198
    %p202 = scmp.eq.s32.totalorder %s15, 0
    %p203 = por %p201, %p202
    %p204 = scmp.ne.s32.totalorder %s196, %s198
    %p205 = scmp.eq.s32.totalorder %s20, 1
    %p206 = por %p204, %p205
    %p207 = scmp.ne.s32.totalorder %s198, %s199
    %p208 = scmp.eq.s32.totalorder %s20, 0
    %p209 = por %p207, %p208
    %p210 = scmp.ne.s32.totalorder %s198, %s199
    %p211 = scmp.eq.s32.totalorder %s21, 1
    %p212 = por %p210, %p211
    %p214 = scmp.ne.s32.totalorder %s199, %s213
    %p215 = scmp.eq.s32.totalorder %s21, 0
    %p216 = por %p214, %p215
    %s217 = ssub.s32 %s15, %s22
    %p218 = scmp.eq.s32.totalorder %s217, 0
    %s220 = sadd.s32 %s219, 1
    %s221 = scalar_select %p218, %s219, %s220
    %p224 = pneg %p218
    %p225 = scmp.eq.s32.totalorder %s15, 1
    %p226 = por %p224, %p225
    %p227 = scmp.ne.s32.totalorder %s219, %s222
    %p228 = scmp.eq.s32.totalorder %s15, 0
    %p229 = por %p227, %p228
    %p230 = scmp.ne.s32.totalorder %s219, %s222
    %p231 = scmp.eq.s32.totalorder %s20, 1
    %p232 = por %p230, %p231
    %p233 = scmp.ne.s32.totalorder %s222, %s223
    %p234 = scmp.eq.s32.totalorder %s20, 0
    %p235 = por %p233, %p234
    %p236 = scmp.ne.s32.totalorder %s222, %s223
    %p237 = scmp.eq.s32.totalorder %s21, 1
    %p238 = por %p236, %p237
    %p240 = scmp.ne.s32.totalorder %s223, %s239
    %p241 = scmp.eq.s32.totalorder %s21, 0
    %p242 = por %p240, %p241
    %p243 = scmp.le.s32.totalorder 1, %s15
    %p244 = scmp.lt.s32.totalorder %s15, 3
    %p245 = pnand %p243, %p244
    %p246 = pneg %p245
    // Predicated region
    $region9: #{autoencoder_forward.1} parent=5 // pred_check
      _
    $region10: #{autoencoder_forward.1} parent=5 // pred_check_branch
      %248 = sbr.rel (%p245) target = $region12
    $region11: #{autoencoder_forward.1} parent=5 // pred_region
      %s249 = ssub.s32 %s15, 1
      // Predicated region
      $region13: #{autoencoder_forward.1} parent=11 // pred_check
        %p250 = pneg %p62
      $region14: #{autoencoder_forward.1} parent=11 // pred_check_branch
        %252 = sbr.rel (%p250) target = $region16
      $region15: #{autoencoder_forward.1} parent=11 // pred_region
        _
      $region16: #{autoencoder_forward.1} parent=11 // pred_fallthru
        _
      // Predicated region
      $region17: #{autoencoder_forward.1} parent=11 // pred_check
        %p253 = pneg %p83
      $region18: #{autoencoder_forward.1} parent=11 // pred_check_branch
        %255 = sbr.rel (%p253) target = $region20
      $region19: #{autoencoder_forward.1} parent=11 // pred_region
        _
      $region20: #{autoencoder_forward.1} parent=11 // pred_fallthru
        _
      // Predicated region
      $region21: #{autoencoder_forward.1} parent=11 // pred_check
        %p256 = pneg %p104
      $region22: #{autoencoder_forward.1} parent=11 // pred_check_branch
        %258 = sbr.rel (%p256) target = $region24
      $region23: #{autoencoder_forward.1} parent=11 // pred_region
        _
      $region24: #{autoencoder_forward.1} parent=11 // pred_fallthru
        _
      // Predicated region
      $region25: #{autoencoder_forward.1} parent=11 // pred_check
        %p259 = pneg %p125
      $region26: #{autoencoder_forward.1} parent=11 // pred_check_branch
        %261 = sbr.rel (%p259) target = $region28
      $region27: #{autoencoder_forward.1} parent=11 // pred_region
        _
      $region28: #{autoencoder_forward.1} parent=11 // pred_fallthru
        _
      // Predicated region
      $region29: #{autoencoder_forward.1} parent=11 // pred_check
        %p262 = pneg %p146
      $region30: #{autoencoder_forward.1} parent=11 // pred_check_branch
        %264 = sbr.rel (%p262) target = $region32
      $region31: #{autoencoder_forward.1} parent=11 // pred_region
        _
      $region32: #{autoencoder_forward.1} parent=11 // pred_fallthru
        _
      // Predicated region
      $region33: #{autoencoder_forward.1} parent=11 // pred_check
        %p265 = pneg %p167
      $region34: #{autoencoder_forward.1} parent=11 // pred_check_branch
        %267 = sbr.rel (%p265) target = $region36
      $region35: #{autoencoder_forward.1} parent=11 // pred_region
        _
      $region36: #{autoencoder_forward.1} parent=11 // pred_fallthru
        _
      // Predicated region
      $region37: #{autoencoder_forward.1} parent=11 // pred_check
        %p268 = pneg %p188
      $region38: #{autoencoder_forward.1} parent=11 // pred_check_branch
        %270 = sbr.rel (%p268) target = $region40
      $region39: #{autoencoder_forward.1} parent=11 // pred_region
        _
      $region40: #{autoencoder_forward.1} parent=11 // pred_fallthru
        _
      // Predicated region
      $region41: #{autoencoder_forward.1} parent=11 // pred_check
        %p271 = pneg %p209
      $region42: #{autoencoder_forward.1} parent=11 // pred_check_branch
        %273 = sbr.rel (%p271) target = $region44
      $region43: #{autoencoder_forward.1} parent=11 // pred_region
        _
      $region44: #{autoencoder_forward.1} parent=11 // pred_fallthru
        _
    $region12: #{autoencoder_forward.1} parent=5 // pred_fallthru
      _
    %p274 = scmp.lt.s32.totalorder %s15, 2
    // Predicated region
    $region45: #{autoencoder_forward.1} parent=5 // pred_check
      %p275 = pneg %p274
    $region46: #{autoencoder_forward.1} parent=5 // pred_check_branch
      %277 = sbr.rel (%p275) target = $region48
    $region47: #{autoencoder_forward.1} parent=5 // pred_region
      // Predicated region
      $region49: #{autoencoder_forward.1} parent=47 // pred_check
        %p278 = pneg %p35
      $region50: #{autoencoder_forward.1} parent=47 // pred_check_branch
        %280 = sbr.rel (%p278) target = $region52
      $region51: #{autoencoder_forward.1} parent=47 // pred_region
        %s281 = smul.u32 16, %s15
        %p282 = scmp.lt.s32.totalorder %s281, 31
        %s283 = scalar_select %p282, %s281, 31
        %s284 = smul.addr %s283, 2
        %s285 = smul.addr %s284, 4
        %s286 = scalar_lea.vmem %s0, %s285
        %s287 = smul.u32 16, %s15
      $region52: #{autoencoder_forward.1} parent=47 // pred_fallthru
        _
    $region48: #{autoencoder_forward.1} parent=5 // pred_fallthru
      _
    %p288 = scmp.le.s32.totalorder 1, %s15
    %p289 = scmp.lt.s32.totalorder %s15, 3
    %p290 = pnand %p288, %p289
    %p291 = pneg %p290
    // Predicated region
    $region53: #{autoencoder_forward.1} parent=5 // pred_check
      _
    $region54: #{autoencoder_forward.1} parent=5 // pred_check_branch
      %293 = sbr.rel (%p290) target = $region56
    $region55: #{autoencoder_forward.1} parent=5 // pred_region
      %s294 = ssub.s32 %s15, 1
      %s295 = smul.u32 16, %s20
      %p296 = scmp.lt.s32.totalorder %s295, 31
      %s297 = scalar_select %p296, %s295, 31
      %s298 = smul.addr %s297, 2
      %s299 = smul.addr %s298, 4
      %s300 = scalar_lea.vmem %s0, %s299
      %p301 = pneg %p41
      %p302 = pneg %p38
      %p303 = pneg %p62
      %p304 = pneg %p59
      %p305 = pneg %p83
      %p306 = pneg %p80
      %p307 = pneg %p104
      %p308 = pneg %p101
      %p309 = pneg %p125
      %p310 = pneg %p122
      %p311 = pneg %p146
      %p312 = pneg %p143
      %p313 = pneg %p167
      %p314 = pneg %p164
      %p315 = pneg %p188
      %p316 = pneg %p185
      %p317 = pneg %p209
      %p318 = pneg %p206
      %p319 = pneg %p235
      %p320 = pneg %p232
      %s321 = smul.u32 16, %s20
      %p322 = scmp.lt.s32.totalorder %s321, 31
      %s323 = scalar_select %p322, %s321, 31
      %s324 = smul.addr %s323, 2
      %s325 = smul.addr %s324, 8
      %s326 = scalar_lea.vmem %s9, %s325
      %s327 = smul.u32 16, %s20
      %p328 = scmp.lt.s32.totalorder %s327, 31
      %s329 = scalar_select %p328, %s327, 31
      %s330 = smul.addr %s329, 2
      %s331 = smul.addr %s330, 4
      %s332 = scalar_lea.vmem %s0, %s331
      %s333 = smul.u32 16, %s20
      %s334 = smul.u32 16, %s20
      %p335 = scmp.lt.s32.totalorder %s334, 31
      %s336 = scalar_select %p335, %s334, 31
      %s337 = smul.addr %s336, 2
      %s338 = smul.addr %s337, 8
      %s339 = scalar_lea.vmem %s9, %s338
      %s340 = smul.u32 16, %s20
      %v342 = vld [vmem:[%s332] sm:$0xff]
      %v343 = vld [vmem:[%s332 + $0x8] sm:$0xff]
      %v344 = vld [vmem:[%s332 + $0x10] sm:$0xff]
      %v345 = vld [vmem:[%s332 + $0x18] sm:$0xff]
      %v346 = vld [vmem:[%s332 + $0x20] sm:$0xff]
      %v347 = vld [vmem:[%s332 + $0x28] sm:$0xff]
      %v348 = vld [vmem:[%s332 + $0x30] sm:$0xff]
      %v349 = vld [vmem:[%s332 + $0x38] sm:$0xff]
      %v350 = vld [vmem:[%s332 + $0x40] sm:$0xff]
      %v351 = vld [vmem:[%s332 + $0x48] sm:$0xff]
      %v352 = vld [vmem:[%s332 + $0x50] sm:$0xff]
      %v353 = vld [vmem:[%s332 + $0x58] sm:$0xff]
      %v354 = vld [vmem:[%s332 + $0x60] sm:$0xff]
      %v355 = vld [vmem:[%s332 + $0x68] sm:$0xff]
      %v356 = vld [vmem:[%s332 + $0x70] sm:$0xff]
      %v357 = vld [vmem:[%s332 + $0x78] sm:$0xff]
      %v358 = vld [vmem:[%s1] sm:$0xf]
      %v359 = vld [vmem:[%s1 + $0x4] sm:$0xf]
      %v360 = vld [vmem:[%s1 + $0x8] sm:$0xf]
      %v361 = vld [vmem:[%s1 + $0xc] sm:$0xf]
      %v362 = vld [vmem:[%s1 + $0x10] sm:$0xf]
      %v363 = vld [vmem:[%s1 + $0x14] sm:$0xf]
      %v364 = vld [vmem:[%s1 + $0x18] sm:$0xf]
      %v365 = vld [vmem:[%s1 + $0x1c] sm:$0xf]
      %v366 = vld [vmem:[%s1 + $0x20] sm:$0xf]
      %v367 = vld [vmem:[%s1 + $0x24] sm:$0xf]
      %v368 = vld [vmem:[%s1 + $0x28] sm:$0xf]
      %v369 = vld [vmem:[%s1 + $0x2c] sm:$0xf]
      %v370 = vld [vmem:[%s1 + $0x30] sm:$0xf]
      %v371 = vld [vmem:[%s1 + $0x34] sm:$0xf]
      %v372 = vld [vmem:[%s1 + $0x38] sm:$0xf]
      %v373 = vld [vmem:[%s1 + $0x3c] sm:$0xf]
      %v374 = vld [vmem:[%s1 + $0x40] sm:$0xf]
      %v375 = vld [vmem:[%s1 + $0x44] sm:$0xf]
      %v376 = vld [vmem:[%s1 + $0x48] sm:$0xf]
      %v377 = vld [vmem:[%s1 + $0x4c] sm:$0xf]
      %v378 = vld [vmem:[%s1 + $0x50] sm:$0xf]
      %v379 = vld [vmem:[%s1 + $0x54] sm:$0xf]
      %v380 = vld [vmem:[%s1 + $0x58] sm:$0xf]
      %v381 = vld [vmem:[%s1 + $0x5c] sm:$0xf]
      %v382 = vld [vmem:[%s1 + $0x60] sm:$0xf]
      %v383 = vld [vmem:[%s1 + $0x64] sm:$0xf]
      %v384 = vld [vmem:[%s1 + $0x68] sm:$0xf]
      %v385 = vld [vmem:[%s1 + $0x6c] sm:$0xf]
      %v386 = vld [vmem:[%s1 + $0x70] sm:$0xf]
      %v387 = vld [vmem:[%s1 + $0x74] sm:$0xf]
      %v388 = vld [vmem:[%s1 + $0x78] sm:$0xf]
      %v389 = vld [vmem:[%s1 + $0x7c] sm:$0xf]
      %v390 = vld [vmem:[%s2] sm:$0x1]
      %v392 = vlaneseq
      %v393 = vshrl.u32 %v392, 7
      %v394 = vsub.s32 0, %v393
      %v395 = vrot.slane %v390, %v394
      %v413 = vunpack.c.l.b16 %v342
      %v414 = vunpack.c.h.b16 %v342
      %v415 = vunpack.c.l.b16 %v343
      %v416 = vunpack.c.h.b16 %v343
      %v417 = vunpack.c.l.b16 %v344
      %v418 = vunpack.c.h.b16 %v344
      %v419 = vunpack.c.l.b16 %v345
      %v420 = vunpack.c.h.b16 %v345
      %v421 = vunpack.c.l.b16 %v346
      %v422 = vunpack.c.h.b16 %v346
      %v423 = vunpack.c.l.b16 %v347
      %v424 = vunpack.c.h.b16 %v347
      %v425 = vunpack.c.l.b16 %v348
      %v426 = vunpack.c.h.b16 %v348
      %v427 = vunpack.c.l.b16 %v349
      %v428 = vunpack.c.h.b16 %v349
      %v429 = vunpack.c.l.b16 %v350
      %v430 = vunpack.c.h.b16 %v350
      %v431 = vunpack.c.l.b16 %v351
      %v432 = vunpack.c.h.b16 %v351
      %v433 = vunpack.c.l.b16 %v352
      %v434 = vunpack.c.h.b16 %v352
      %v435 = vunpack.c.l.b16 %v353
      %v436 = vunpack.c.h.b16 %v353
      %v437 = vunpack.c.l.b16 %v354
      %v438 = vunpack.c.h.b16 %v354
      %v439 = vunpack.c.l.b16 %v355
      %v440 = vunpack.c.h.b16 %v355
      %v441 = vunpack.c.l.b16 %v356
      %v442 = vunpack.c.h.b16 %v356
      %v443 = vunpack.c.l.b16 %v357
      %v444 = vunpack.c.h.b16 %v357
      %v445 = vpack.c.b16 %v415, %v413
      %v446 = vpack.c.b16 %v416, %v414
      %v447 = vpack.c.b16 %v419, %v417
      %v448 = vpack.c.b16 %v420, %v418
      %v449 = vpack.c.b16 %v423, %v421
      %v450 = vpack.c.b16 %v424, %v422
      %v451 = vpack.c.b16 %v427, %v425
      %v452 = vpack.c.b16 %v428, %v426
      %v453 = vpack.c.b16 %v431, %v429
      %v454 = vpack.c.b16 %v432, %v430
      %v455 = vpack.c.b16 %v435, %v433
      %v456 = vpack.c.b16 %v436, %v434
      %v457 = vpack.c.b16 %v439, %v437
      %v458 = vpack.c.b16 %v440, %v438
      %v459 = vpack.c.b16 %v443, %v441
      %v460 = vpack.c.b16 %v444, %v442
      %v509 = vunpack.c.l.b16 %v358
      %v510 = vunpack.c.l.b16 %v359
      %v511 = vunpack.c.l.b16 %v360
      %v512 = vunpack.c.l.b16 %v361
      %v513 = vunpack.c.l.b16 %v362
      %v514 = vunpack.c.l.b16 %v363
      %v515 = vunpack.c.l.b16 %v364
      %v516 = vunpack.c.l.b16 %v365
      %v517 = vunpack.c.l.b16 %v366
      %v518 = vunpack.c.l.b16 %v367
      %v519 = vunpack.c.l.b16 %v368
      %v520 = vunpack.c.l.b16 %v369
      %v521 = vunpack.c.l.b16 %v370
      %v522 = vunpack.c.l.b16 %v371
      %v523 = vunpack.c.l.b16 %v372
      %v524 = vunpack.c.l.b16 %v373
      %v525 = vunpack.c.l.b16 %v374
      %v526 = vunpack.c.l.b16 %v375
      %v527 = vunpack.c.l.b16 %v376
      %v528 = vunpack.c.l.b16 %v377
      %v529 = vunpack.c.l.b16 %v378
      %v530 = vunpack.c.l.b16 %v379
      %v531 = vunpack.c.l.b16 %v380
      %v532 = vunpack.c.l.b16 %v381
      %v533 = vunpack.c.l.b16 %v382
      %v534 = vunpack.c.l.b16 %v383
      %v535 = vunpack.c.l.b16 %v384
      %v536 = vunpack.c.l.b16 %v385
      %v537 = vunpack.c.l.b16 %v386
      %v538 = vunpack.c.l.b16 %v387
      %v539 = vunpack.c.l.b16 %v388
      %v540 = vunpack.c.l.b16 %v389
      %v541 = vpack.c.b16 %v510, %v509
      %v542 = vpack.c.b16 %v512, %v511
      %v543 = vpack.c.b16 %v514, %v513
      %v544 = vpack.c.b16 %v516, %v515
      %v545 = vpack.c.b16 %v518, %v517
      %v546 = vpack.c.b16 %v520, %v519
      %v547 = vpack.c.b16 %v522, %v521
      %v548 = vpack.c.b16 %v524, %v523
      %v549 = vpack.c.b16 %v526, %v525
      %v550 = vpack.c.b16 %v528, %v527
      %v551 = vpack.c.b16 %v530, %v529
      %v552 = vpack.c.b16 %v532, %v531
      %v553 = vpack.c.b16 %v534, %v533
      %v554 = vpack.c.b16 %v536, %v535
      %v555 = vpack.c.b16 %v538, %v537
      %v556 = vpack.c.b16 %v540, %v539
      %573 = vmatprep.subr.bf16.mxu0 0
      %574 = vmatpush1.bf16.msra.mxu0 %v548
      %575 = vmatprep.subr.bf16.mxu0 0
      %576 = vmatpush1.bf16.msra.mxu0 %v547
      %577 = vmatprep.subr.bf16.mxu0 0
      %578 = vmatpush1.bf16.msra.mxu0 %v546
      %579 = vmatprep.subr.bf16.mxu0 0
      %580 = vmatpush1.bf16.msra.mxu0 %v545
      %581 = vmatprep.subr.bf16.mxu0 0
      %582 = vmatpush1.bf16.msra.mxu0 %v544
      %583 = vmatprep.subr.bf16.mxu0 0
      %584 = vmatpush1.bf16.msra.mxu0 %v543
      %585 = vmatprep.subr.bf16.mxu0 0
      %586 = vmatpush1.bf16.msra.mxu0 %v542
      %587 = vmatprep.subr.bf16.mxu0 0
      %588 = vmatpush1.bf16.msra.mxu0 %v541
      %589 = vmatprep.subr.bf16.mxu0 0
      %590 = vmatpush2.bf16.msra.mxu0 %v556
      %591 = vmatprep.subr.bf16.mxu0 0
      %592 = vmatpush2.bf16.msra.mxu0 %v555
      %593 = vmatprep.subr.bf16.mxu0 0
      %594 = vmatpush2.bf16.msra.mxu0 %v554
      %595 = vmatprep.subr.bf16.mxu0 0
      %596 = vmatpush2.bf16.msra.mxu0 %v553
      %597 = vmatprep.subr.bf16.mxu0 0
      %598 = vmatpush2.bf16.msra.mxu0 %v552
      %599 = vmatprep.subr.bf16.mxu0 0
      %600 = vmatpush2.bf16.msra.mxu0 %v551
      %601 = vmatprep.subr.bf16.mxu0 0
      %602 = vmatpush2.bf16.msra.mxu0 %v550
      %603 = vmatprep.subr.bf16.mxu0 0
      %604 = vmatpush2.bf16.msra.mxu0 %v549
      %605 = vmatprep.mubr.bf16.mxu0 %v446
      %606 = vmatmul.mubr.bf16.gmra.mxu0 %v445
      %v607 = vpop.f32.mrf.mxu0
      %v608 = vadd.f32 %v395, %v607
      %v609 = vpop.f32.mrf.mxu0
      %v610 = vpop.f32.mrf.mxu0
      %v611 = vadd.f32 %v395, %v610
      %v612 = vpop.f32.mrf.mxu0
      %613 = vmatprep.mubr.bf16.mxu0 %v448
      %614 = vmatmul.mubr.bf16.gmra.mxu0 %v447
      %v615 = vpop.f32.mrf.mxu0
      %v616 = vadd.f32 %v395, %v615
      %v617 = vpop.f32.mrf.mxu0
      %v618 = vpop.f32.mrf.mxu0
      %v619 = vadd.f32 %v395, %v618
      %v620 = vpop.f32.mrf.mxu0
      %621 = vmatprep.mubr.bf16.mxu0 %v450
      %622 = vmatmul.mubr.bf16.gmra.mxu0 %v449
      %v623 = vpop.f32.mrf.mxu0
      %v624 = vadd.f32 %v395, %v623
      %v625 = vpop.f32.mrf.mxu0
      %v626 = vpop.f32.mrf.mxu0
      %v627 = vadd.f32 %v395, %v626
      %v628 = vpop.f32.mrf.mxu0
      %629 = vmatprep.mubr.bf16.mxu0 %v452
      %630 = vmatmul.mubr.bf16.gmra.mxu0 %v451
      %v631 = vpop.f32.mrf.mxu0
      %v632 = vadd.f32 %v395, %v631
      %v633 = vpop.f32.mrf.mxu0
      %v634 = vpop.f32.mrf.mxu0
      %v635 = vadd.f32 %v395, %v634
      %v636 = vpop.f32.mrf.mxu0
      %637 = vmatprep.mubr.bf16.mxu0 %v454
      %638 = vmatmul.mubr.bf16.gmra.mxu0 %v453
      %v639 = vpop.f32.mrf.mxu0
      %v640 = vadd.f32 %v395, %v639
      %v641 = vpop.f32.mrf.mxu0
      %v642 = vpop.f32.mrf.mxu0
      %v643 = vadd.f32 %v395, %v642
      %v644 = vpop.f32.mrf.mxu0
      %645 = vmatprep.mubr.bf16.mxu0 %v456
      %646 = vmatmul.mubr.bf16.gmra.mxu0 %v455
      %v647 = vpop.f32.mrf.mxu0
      %v648 = vadd.f32 %v395, %v647
      %v649 = vpop.f32.mrf.mxu0
      %v650 = vpop.f32.mrf.mxu0
      %v651 = vadd.f32 %v395, %v650
      %v652 = vpop.f32.mrf.mxu0
      %653 = vmatprep.mubr.bf16.mxu0 %v458
      %654 = vmatmul.mubr.bf16.gmra.mxu0 %v457
      %v655 = vpop.f32.mrf.mxu0
      %v656 = vadd.f32 %v395, %v655
      %v657 = vpop.f32.mrf.mxu0
      %v658 = vpop.f32.mrf.mxu0
      %v659 = vadd.f32 %v395, %v658
      %v660 = vpop.f32.mrf.mxu0
      %661 = vmatprep.mubr.bf16.mxu0 %v460
      %662 = vmatmul.mubr.bf16.gmra.mxu0 %v459
      %v663 = vpop.f32.mrf.mxu0
      %v664 = vadd.f32 %v395, %v663
      %v665 = vpop.f32.mrf.mxu0
      %v666 = vpop.f32.mrf.mxu0
      %v667 = vadd.f32 %v395, %v666
      %v668 = vpop.f32.mrf.mxu0
      %669 = vdwg.mxu0
      %v670 = vmax.f32 %v608, 0.0
      %v671 = vmax.f32 %v611, 0.0
      %v672 = vmax.f32 %v616, 0.0
      %v673 = vmax.f32 %v619, 0.0
      %v674 = vmax.f32 %v624, 0.0
      %v675 = vmax.f32 %v627, 0.0
      %v676 = vmax.f32 %v632, 0.0
      %v677 = vmax.f32 %v635, 0.0
      %v678 = vmax.f32 %v640, 0.0
      %v679 = vmax.f32 %v643, 0.0
      %v680 = vmax.f32 %v648, 0.0
      %v681 = vmax.f32 %v651, 0.0
      %v682 = vmax.f32 %v656, 0.0
      %v683 = vmax.f32 %v659, 0.0
      %v684 = vmax.f32 %v664, 0.0
      %v685 = vmax.f32 %v667, 0.0
      %v686 = vpack.c.bf16 %v671, %v670
      %v687 = vpack.c.bf16 %v673, %v672
      %v688 = vpack.c.bf16 %v675, %v674
      %v689 = vpack.c.bf16 %v677, %v676
      %v690 = vpack.c.bf16 %v679, %v678
      %v691 = vpack.c.bf16 %v681, %v680
      %v692 = vpack.c.bf16 %v683, %v682
      %v693 = vpack.c.bf16 %v685, %v684
      %v694 = vld [vmem:[%s3] sm:$0xf]
      %v695 = vld [vmem:[%s3 + $0x4] sm:$0xf]
      %v696 = vld [vmem:[%s3 + $0x8] sm:$0xf]
      %v697 = vld [vmem:[%s3 + $0xc] sm:$0xf]
      %v698 = vld [vmem:[%s3 + $0x10] sm:$0xf]
      %v699 = vld [vmem:[%s3 + $0x14] sm:$0xf]
      %v700 = vld [vmem:[%s3 + $0x18] sm:$0xf]
      %v701 = vld [vmem:[%s3 + $0x1c] sm:$0xf]
      %v702 = vld [vmem:[%s3 + $0x20] sm:$0xf]
      %v703 = vld [vmem:[%s3 + $0x24] sm:$0xf]
      %v704 = vld [vmem:[%s3 + $0x28] sm:$0xf]
      %v705 = vld [vmem:[%s3 + $0x2c] sm:$0xf]
      %v706 = vld [vmem:[%s3 + $0x30] sm:$0xf]
      %v707 = vld [vmem:[%s3 + $0x34] sm:$0xf]
      %v708 = vld [vmem:[%s3 + $0x38] sm:$0xf]
      %v709 = vld [vmem:[%s3 + $0x3c] sm:$0xf]
      %v710 = vld [vmem:[%s4] sm:$0x1]
      %v712 = vlaneseq
      %v713 = vshrl.u32 %v712, 7
      %v714 = vsub.s32 0, %v713
      %v715 = vrot.slane %v710, %v714
      %v733 = vunpack.c.l.b16 %v694
      %v734 = vunpack.c.l.b16 %v695
      %v735 = vunpack.c.l.b16 %v696
      %v736 = vunpack.c.l.b16 %v697
      %v737 = vunpack.c.l.b16 %v698
      %v738 = vunpack.c.l.b16 %v699
      %v739 = vunpack.c.l.b16 %v700
      %v740 = vunpack.c.l.b16 %v701
      %v741 = vunpack.c.l.b16 %v702
      %v742 = vunpack.c.l.b16 %v703
      %v743 = vunpack.c.l.b16 %v704
      %v744 = vunpack.c.l.b16 %v705
      %v745 = vunpack.c.l.b16 %v706
      %v746 = vunpack.c.l.b16 %v707
      %v747 = vunpack.c.l.b16 %v708
      %v748 = vunpack.c.l.b16 %v709
      %v749 = vpack.c.b16 %v734, %v733
      %v750 = vpack.c.b16 %v736, %v735
      %v751 = vpack.c.b16 %v738, %v737
      %v752 = vpack.c.b16 %v740, %v739
      %v753 = vpack.c.b16 %v742, %v741
      %v754 = vpack.c.b16 %v744, %v743
      %v755 = vpack.c.b16 %v746, %v745
      %v756 = vpack.c.b16 %v748, %v747
      %765 = vmatprep.subr.bf16.mxu0 0
      %766 = vmatpush1.bf16.msra.mxu0 %v756
      %767 = vmatprep.subr.bf16.mxu0 0
      %768 = vmatpush1.bf16.msra.mxu0 %v755
      %769 = vmatprep.subr.bf16.mxu0 0
      %770 = vmatpush1.bf16.msra.mxu0 %v754
      %771 = vmatprep.subr.bf16.mxu0 0
      %772 = vmatpush1.bf16.msra.mxu0 %v753
      %773 = vmatprep.subr.bf16.mxu0 0
      %774 = vmatpush1.bf16.msra.mxu0 %v752
      %775 = vmatprep.subr.bf16.mxu0 0
      %776 = vmatpush1.bf16.msra.mxu0 %v751
      %777 = vmatprep.subr.bf16.mxu0 0
      %778 = vmatpush1.bf16.msra.mxu0 %v750
      %779 = vmatprep.subr.bf16.mxu0 0
      %780 = vmatpush1.bf16.msra.mxu0 %v749
      %781 = vmatprep.subr.bf16.mxu0 0
      %782 = vmatpush2.bf16.msra.mxu0 0
      %783 = vmatprep.subr.bf16.mxu0 0
      %784 = vmatpush2.bf16.msra.mxu0 0
      %785 = vmatprep.subr.bf16.mxu0 0
      %786 = vmatpush2.bf16.msra.mxu0 0
      %787 = vmatprep.subr.bf16.mxu0 0
      %788 = vmatpush2.bf16.msra.mxu0 0
      %789 = vmatprep.subr.bf16.mxu0 0
      %790 = vmatpush2.bf16.msra.mxu0 0
      %791 = vmatprep.subr.bf16.mxu0 0
      %792 = vmatpush2.bf16.msra.mxu0 0
      %793 = vmatprep.subr.bf16.mxu0 0
      %794 = vmatpush2.bf16.msra.mxu0 0
      %795 = vmatprep.subr.bf16.mxu0 0
      %796 = vmatpush2.bf16.msra.mxu0 0
      %797 = vmatprep.mubr.bf16.mxu0 0
      %798 = vmatmul.mubr.bf16.gmra.mxu0 %v686
      %v799 = vpop.f32.mrf.mxu0
      %v800 = vadd.f32 %v715, %v799
      %v801 = vpop.f32.mrf.mxu0
      %v802 = vpop.f32.mrf.mxu0
      %v803 = vadd.f32 %v715, %v802
      %v804 = vpop.f32.mrf.mxu0
      %805 = vmatprep.mubr.bf16.mxu0 0
      %806 = vmatmul.mubr.bf16.gmra.mxu0 %v687
      %v807 = vpop.f32.mrf.mxu0
      %v808 = vadd.f32 %v715, %v807
      %v809 = vpop.f32.mrf.mxu0
      %v810 = vpop.f32.mrf.mxu0
      %v811 = vadd.f32 %v715, %v810
      %v812 = vpop.f32.mrf.mxu0
      %813 = vmatprep.mubr.bf16.mxu0 0
      %814 = vmatmul.mubr.bf16.gmra.mxu0 %v688
      %v815 = vpop.f32.mrf.mxu0
      %v816 = vadd.f32 %v715, %v815
      %v817 = vpop.f32.mrf.mxu0
      %v818 = vpop.f32.mrf.mxu0
      %v819 = vadd.f32 %v715, %v818
      %v820 = vpop.f32.mrf.mxu0
      %821 = vmatprep.mubr.bf16.mxu0 0
      %822 = vmatmul.mubr.bf16.gmra.mxu0 %v689
      %v823 = vpop.f32.mrf.mxu0
      %v824 = vadd.f32 %v715, %v823
      %v825 = vpop.f32.mrf.mxu0
      %v826 = vpop.f32.mrf.mxu0
      %v827 = vadd.f32 %v715, %v826
      %v828 = vpop.f32.mrf.mxu0
      %829 = vmatprep.mubr.bf16.mxu0 0
      %830 = vmatmul.mubr.bf16.gmra.mxu0 %v690
      %v831 = vpop.f32.mrf.mxu0
      %v832 = vadd.f32 %v715, %v831
      %v833 = vpop.f32.mrf.mxu0
      %v834 = vpop.f32.mrf.mxu0
      %v835 = vadd.f32 %v715, %v834
      %v836 = vpop.f32.mrf.mxu0
      %837 = vmatprep.mubr.bf16.mxu0 0
      %838 = vmatmul.mubr.bf16.gmra.mxu0 %v691
      %v839 = vpop.f32.mrf.mxu0
      %v840 = vadd.f32 %v715, %v839
      %v841 = vpop.f32.mrf.mxu0
      %v842 = vpop.f32.mrf.mxu0
      %v843 = vadd.f32 %v715, %v842
      %v844 = vpop.f32.mrf.mxu0
      %845 = vmatprep.mubr.bf16.mxu0 0
      %846 = vmatmul.mubr.bf16.gmra.mxu0 %v692
      %v847 = vpop.f32.mrf.mxu0
      %v848 = vadd.f32 %v715, %v847
      %v849 = vpop.f32.mrf.mxu0
      %v850 = vpop.f32.mrf.mxu0
      %v851 = vadd.f32 %v715, %v850
      %v852 = vpop.f32.mrf.mxu0
      %853 = vmatprep.mubr.bf16.mxu0 0
      %854 = vmatmul.mubr.bf16.gmra.mxu0 %v693
      %v855 = vpop.f32.mrf.mxu0
      %v856 = vadd.f32 %v715, %v855
      %v857 = vpop.f32.mrf.mxu0
      %v858 = vpop.f32.mrf.mxu0
      %v859 = vadd.f32 %v715, %v858
      %v860 = vpop.f32.mrf.mxu0
      %861 = vdwg.mxu0
      %v862 = vpack.c.bf16 %v803, %v800
      %v863 = vpack.c.bf16 %v811, %v808
      %v864 = vpack.c.bf16 %v819, %v816
      %v865 = vpack.c.bf16 %v827, %v824
      %v866 = vpack.c.bf16 %v835, %v832
      %v867 = vpack.c.bf16 %v843, %v840
      %v868 = vpack.c.bf16 %v851, %v848
      %v869 = vpack.c.bf16 %v859, %v856
      %v870 = vld [vmem:[%s5] sm:$0xf]
      %v871 = vld [vmem:[%s5 + $0x4] sm:$0xf]
      %v872 = vld [vmem:[%s5 + $0x8] sm:$0xf]
      %v873 = vld [vmem:[%s5 + $0xc] sm:$0xf]
      %v874 = vld [vmem:[%s5 + $0x10] sm:$0xf]
      %v875 = vld [vmem:[%s5 + $0x14] sm:$0xf]
      %v876 = vld [vmem:[%s5 + $0x18] sm:$0xf]
      %v877 = vld [vmem:[%s5 + $0x1c] sm:$0xf]
      %v878 = vld [vmem:[%s5 + $0x20] sm:$0xf]
      %v879 = vld [vmem:[%s5 + $0x24] sm:$0xf]
      %v880 = vld [vmem:[%s5 + $0x28] sm:$0xf]
      %v881 = vld [vmem:[%s5 + $0x2c] sm:$0xf]
      %v882 = vld [vmem:[%s5 + $0x30] sm:$0xf]
      %v883 = vld [vmem:[%s5 + $0x34] sm:$0xf]
      %v884 = vld [vmem:[%s5 + $0x38] sm:$0xf]
      %v885 = vld [vmem:[%s5 + $0x3c] sm:$0xf]
      %v886 = vld [vmem:[%s6] sm:$0x1]
      %v888 = vlaneseq
      %v889 = vshrl.u32 %v888, 7
      %v890 = vsub.s32 0, %v889
      %v891 = vrot.slane %v886, %v890
      %v909 = vunpack.c.l.b16 %v870
      %v910 = vunpack.c.l.b16 %v871
      %v911 = vunpack.c.l.b16 %v872
      %v912 = vunpack.c.l.b16 %v873
      %v913 = vunpack.c.l.b16 %v874
      %v914 = vunpack.c.l.b16 %v875
      %v915 = vunpack.c.l.b16 %v876
      %v916 = vunpack.c.l.b16 %v877
      %v917 = vunpack.c.l.b16 %v878
      %v918 = vunpack.c.l.b16 %v879
      %v919 = vunpack.c.l.b16 %v880
      %v920 = vunpack.c.l.b16 %v881
      %v921 = vunpack.c.l.b16 %v882
      %v922 = vunpack.c.l.b16 %v883
      %v923 = vunpack.c.l.b16 %v884
      %v924 = vunpack.c.l.b16 %v885
      %v925 = vpack.c.b16 %v910, %v909
      %v926 = vpack.c.b16 %v912, %v911
      %v927 = vpack.c.b16 %v914, %v913
      %v928 = vpack.c.b16 %v916, %v915
      %v929 = vpack.c.b16 %v918, %v917
      %v930 = vpack.c.b16 %v920, %v919
      %v931 = vpack.c.b16 %v922, %v921
      %v932 = vpack.c.b16 %v924, %v923
      %941 = vmatprep.subr.bf16.mxu0 0
      %942 = vmatpush1.bf16.msra.mxu0 %v932
      %943 = vmatprep.subr.bf16.mxu0 0
      %944 = vmatpush1.bf16.msra.mxu0 %v931
      %945 = vmatprep.subr.bf16.mxu0 0
      %946 = vmatpush1.bf16.msra.mxu0 %v930
      %947 = vmatprep.subr.bf16.mxu0 0
      %948 = vmatpush1.bf16.msra.mxu0 %v929
      %949 = vmatprep.subr.bf16.mxu0 0
      %950 = vmatpush1.bf16.msra.mxu0 %v928
      %951 = vmatprep.subr.bf16.mxu0 0
      %952 = vmatpush1.bf16.msra.mxu0 %v927
      %953 = vmatprep.subr.bf16.mxu0 0
      %954 = vmatpush1.bf16.msra.mxu0 %v926
      %955 = vmatprep.subr.bf16.mxu0 0
      %956 = vmatpush1.bf16.msra.mxu0 %v925
      %957 = vmatprep.subr.bf16.mxu0 0
      %958 = vmatpush2.bf16.msra.mxu0 0
      %959 = vmatprep.subr.bf16.mxu0 0
      %960 = vmatpush2.bf16.msra.mxu0 0
      %961 = vmatprep.subr.bf16.mxu0 0
      %962 = vmatpush2.bf16.msra.mxu0 0
      %963 = vmatprep.subr.bf16.mxu0 0
      %964 = vmatpush2.bf16.msra.mxu0 0
      %965 = vmatprep.subr.bf16.mxu0 0
      %966 = vmatpush2.bf16.msra.mxu0 0
      %967 = vmatprep.subr.bf16.mxu0 0
      %968 = vmatpush2.bf16.msra.mxu0 0
      %969 = vmatprep.subr.bf16.mxu0 0
      %970 = vmatpush2.bf16.msra.mxu0 0
      %971 = vmatprep.subr.bf16.mxu0 0
      %972 = vmatpush2.bf16.msra.mxu0 0
      %973 = vmatprep.mubr.bf16.mxu0 0
      %974 = vmatmul.mubr.bf16.gmra.mxu0 %v862
      %v975 = vpop.f32.mrf.mxu0
      %v976 = vadd.f32 %v891, %v975
      %v977 = vpop.f32.mrf.mxu0
      %v978 = vpop.f32.mrf.mxu0
      %v979 = vadd.f32 %v891, %v978
      %v980 = vpop.f32.mrf.mxu0
      %981 = vmatprep.mubr.bf16.mxu0 0
      %982 = vmatmul.mubr.bf16.gmra.mxu0 %v863
      %v983 = vpop.f32.mrf.mxu0
      %v984 = vadd.f32 %v891, %v983
      %v985 = vpop.f32.mrf.mxu0
      %v986 = vpop.f32.mrf.mxu0
      %v987 = vadd.f32 %v891, %v986
      %v988 = vpop.f32.mrf.mxu0
      %989 = vmatprep.mubr.bf16.mxu0 0
      %990 = vmatmul.mubr.bf16.gmra.mxu0 %v864
      %v991 = vpop.f32.mrf.mxu0
      %v992 = vadd.f32 %v891, %v991
      %v993 = vpop.f32.mrf.mxu0
      %v994 = vpop.f32.mrf.mxu0
      %v995 = vadd.f32 %v891, %v994
      %v996 = vpop.f32.mrf.mxu0
      %997 = vmatprep.mubr.bf16.mxu0 0
      %998 = vmatmul.mubr.bf16.gmra.mxu0 %v865
      %v999 = vpop.f32.mrf.mxu0
      %v1000 = vadd.f32 %v891, %v999
      %v1001 = vpop.f32.mrf.mxu0
      %v1002 = vpop.f32.mrf.mxu0
      %v1003 = vadd.f32 %v891, %v1002
      %v1004 = vpop.f32.mrf.mxu0
      %1005 = vmatprep.mubr.bf16.mxu0 0
      %1006 = vmatmul.mubr.bf16.gmra.mxu0 %v866
      %v1007 = vpop.f32.mrf.mxu0
      %v1008 = vadd.f32 %v891, %v1007
      %v1009 = vpop.f32.mrf.mxu0
      %v1010 = vpop.f32.mrf.mxu0
      %v1011 = vadd.f32 %v891, %v1010
      %v1012 = vpop.f32.mrf.mxu0
      %1013 = vmatprep.mubr.bf16.mxu0 0
      %1014 = vmatmul.mubr.bf16.gmra.mxu0 %v867
      %v1015 = vpop.f32.mrf.mxu0
      %v1016 = vadd.f32 %v891, %v1015
      %v1017 = vpop.f32.mrf.mxu0
      %v1018 = vpop.f32.mrf.mxu0
      %v1019 = vadd.f32 %v891, %v1018
      %v1020 = vpop.f32.mrf.mxu0
      %1021 = vmatprep.mubr.bf16.mxu0 0
      %1022 = vmatmul.mubr.bf16.gmra.mxu0 %v868
      %v1023 = vpop.f32.mrf.mxu0
      %v1024 = vadd.f32 %v891, %v1023
      %v1025 = vpop.f32.mrf.mxu0
      %v1026 = vpop.f32.mrf.mxu0
      %v1027 = vadd.f32 %v891, %v1026
      %v1028 = vpop.f32.mrf.mxu0
      %1029 = vmatprep.mubr.bf16.mxu0 0
      %1030 = vmatmul.mubr.bf16.gmra.mxu0 %v869
      %v1031 = vpop.f32.mrf.mxu0
      %v1032 = vadd.f32 %v891, %v1031
      %v1033 = vpop.f32.mrf.mxu0
      %v1034 = vpop.f32.mrf.mxu0
      %v1035 = vadd.f32 %v891, %v1034
      %v1036 = vpop.f32.mrf.mxu0
      %1037 = vdwg.mxu0
      %v1038 = vmax.f32 %v976, 0.0
      %v1039 = vmax.f32 %v979, 0.0
      %v1040 = vmax.f32 %v984, 0.0
      %v1041 = vmax.f32 %v987, 0.0
      %v1042 = vmax.f32 %v992, 0.0
      %v1043 = vmax.f32 %v995, 0.0
      %v1044 = vmax.f32 %v1000, 0.0
      %v1045 = vmax.f32 %v1003, 0.0
      %v1046 = vmax.f32 %v1008, 0.0
      %v1047 = vmax.f32 %v1011, 0.0
      %v1048 = vmax.f32 %v1016, 0.0
      %v1049 = vmax.f32 %v1019, 0.0
      %v1050 = vmax.f32 %v1024, 0.0
      %v1051 = vmax.f32 %v1027, 0.0
      %v1052 = vmax.f32 %v1032, 0.0
      %v1053 = vmax.f32 %v1035, 0.0
      %v1054 = vpack.c.bf16 %v1039, %v1038
      %v1055 = vpack.c.bf16 %v1041, %v1040
      %v1056 = vpack.c.bf16 %v1043, %v1042
      %v1057 = vpack.c.bf16 %v1045, %v1044
      %v1058 = vpack.c.bf16 %v1047, %v1046
      %v1059 = vpack.c.bf16 %v1049, %v1048
      %v1060 = vpack.c.bf16 %v1051, %v1050
      %v1061 = vpack.c.bf16 %v1053, %v1052
      %v1062 = vld [vmem:[%s7] sm:$0xff]
      %v1063 = vld [vmem:[%s7 + $0x8] sm:$0xff]
      %v1064 = vld [vmem:[%s7 + $0x10] sm:$0xff]
      %v1065 = vld [vmem:[%s7 + $0x18] sm:$0xff]
      %v1066 = vld [vmem:[%s7 + $0x20] sm:$0xff]
      %v1067 = vld [vmem:[%s7 + $0x28] sm:$0xff]
      %v1068 = vld [vmem:[%s7 + $0x30] sm:$0xff]
      %v1069 = vld [vmem:[%s7 + $0x38] sm:$0xff]
      %v1070 = vld [vmem:[%s7 + $0x40] sm:$0xff]
      %v1071 = vld [vmem:[%s7 + $0x48] sm:$0xff]
      %v1072 = vld [vmem:[%s7 + $0x50] sm:$0xff]
      %v1073 = vld [vmem:[%s7 + $0x58] sm:$0xff]
      %v1074 = vld [vmem:[%s7 + $0x60] sm:$0xff]
      %v1075 = vld [vmem:[%s7 + $0x68] sm:$0xff]
      %v1076 = vld [vmem:[%s7 + $0x70] sm:$0xff]
      %v1077 = vld [vmem:[%s7 + $0x78] sm:$0xff]
      %v1078 = vld [vmem:[%s8] sm:$0x3]
      %v1080 = vlaneseq
      %v1081 = vshrl.u32 %v1080, 7
      %v1082 = vsub.s32 0, %v1081
      %v1083 = vrot.slane %v1078, %v1082
      %v1084 = vlaneseq
      %v1085 = vshrl.u32 %v1084, 7
      %v1086 = vsub.s32 1, %v1085
      %v1087 = vrot.slane %v1078, %v1086
      %v1106 = vunpack.c.l.b16 %v1062
      %v1107 = vunpack.c.h.b16 %v1062
      %v1108 = vunpack.c.l.b16 %v1063
      %v1109 = vunpack.c.h.b16 %v1063
      %v1110 = vunpack.c.l.b16 %v1064
      %v1111 = vunpack.c.h.b16 %v1064
      %v1112 = vunpack.c.l.b16 %v1065
      %v1113 = vunpack.c.h.b16 %v1065
      %v1114 = vunpack.c.l.b16 %v1066
      %v1115 = vunpack.c.h.b16 %v1066
      %v1116 = vunpack.c.l.b16 %v1067
      %v1117 = vunpack.c.h.b16 %v1067
      %v1118 = vunpack.c.l.b16 %v1068
      %v1119 = vunpack.c.h.b16 %v1068
      %v1120 = vunpack.c.l.b16 %v1069
      %v1121 = vunpack.c.h.b16 %v1069
      %v1122 = vunpack.c.l.b16 %v1070
      %v1123 = vunpack.c.h.b16 %v1070
      %v1124 = vunpack.c.l.b16 %v1071
      %v1125 = vunpack.c.h.b16 %v1071
      %v1126 = vunpack.c.l.b16 %v1072
      %v1127 = vunpack.c.h.b16 %v1072
      %v1128 = vunpack.c.l.b16 %v1073
      %v1129 = vunpack.c.h.b16 %v1073
      %v1130 = vunpack.c.l.b16 %v1074
      %v1131 = vunpack.c.h.b16 %v1074
      %v1132 = vunpack.c.l.b16 %v1075
      %v1133 = vunpack.c.h.b16 %v1075
      %v1134 = vunpack.c.l.b16 %v1076
      %v1135 = vunpack.c.h.b16 %v1076
      %v1136 = vunpack.c.l.b16 %v1077
      %v1137 = vunpack.c.h.b16 %v1077
      %v1138 = vpack.c.b16 %v1108, %v1106
      %v1139 = vpack.c.b16 %v1109, %v1107
      %v1140 = vpack.c.b16 %v1112, %v1110
      %v1141 = vpack.c.b16 %v1113, %v1111
      %v1142 = vpack.c.b16 %v1116, %v1114
      %v1143 = vpack.c.b16 %v1117, %v1115
      %v1144 = vpack.c.b16 %v1120, %v1118
      %v1145 = vpack.c.b16 %v1121, %v1119
      %v1146 = vpack.c.b16 %v1124, %v1122
      %v1147 = vpack.c.b16 %v1125, %v1123
      %v1148 = vpack.c.b16 %v1128, %v1126
      %v1149 = vpack.c.b16 %v1129, %v1127
      %v1150 = vpack.c.b16 %v1132, %v1130
      %v1151 = vpack.c.b16 %v1133, %v1131
      %v1152 = vpack.c.b16 %v1136, %v1134
      %v1153 = vpack.c.b16 %v1137, %v1135
      %1170 = vmatprep.subr.bf16.mxu0 %v1153
      %1171 = vmatpush1.bf16.msra.mxu0 %v1152
      %1172 = vmatprep.subr.bf16.mxu0 %v1151
      %1173 = vmatpush1.bf16.msra.mxu0 %v1150
      %1174 = vmatprep.subr.bf16.mxu0 %v1149
      %1175 = vmatpush1.bf16.msra.mxu0 %v1148
      %1176 = vmatprep.subr.bf16.mxu0 %v1147
      %1177 = vmatpush1.bf16.msra.mxu0 %v1146
      %1178 = vmatprep.subr.bf16.mxu0 %v1145
      %1179 = vmatpush1.bf16.msra.mxu0 %v1144
      %1180 = vmatprep.subr.bf16.mxu0 %v1143
      %1181 = vmatpush1.bf16.msra.mxu0 %v1142
      %1182 = vmatprep.subr.bf16.mxu0 %v1141
      %1183 = vmatpush1.bf16.msra.mxu0 %v1140
      %1184 = vmatprep.subr.bf16.mxu0 %v1139
      %1185 = vmatpush1.bf16.msra.mxu0 %v1138
      %1186 = vmatprep.subr.bf16.mxu0 0
      %1187 = vmatpush2.bf16.msra.mxu0 0
      %1188 = vmatprep.subr.bf16.mxu0 0
      %1189 = vmatpush2.bf16.msra.mxu0 0
      %1190 = vmatprep.subr.bf16.mxu0 0
      %1191 = vmatpush2.bf16.msra.mxu0 0
      %1192 = vmatprep.subr.bf16.mxu0 0
      %1193 = vmatpush2.bf16.msra.mxu0 0
      %1194 = vmatprep.subr.bf16.mxu0 0
      %1195 = vmatpush2.bf16.msra.mxu0 0
      %1196 = vmatprep.subr.bf16.mxu0 0
      %1197 = vmatpush2.bf16.msra.mxu0 0
      %1198 = vmatprep.subr.bf16.mxu0 0
      %1199 = vmatpush2.bf16.msra.mxu0 0
      %1200 = vmatprep.subr.bf16.mxu0 0
      %1201 = vmatpush2.bf16.msra.mxu0 0
      %1202 = vmatprep.mubr.bf16.mxu0 0
      %1203 = vmatmul.mubr.bf16.gmra.mxu0 %v1054
      %v1204 = vpop.f32.mrf.mxu0
      %v1205 = vadd.f32 %v1083, %v1204
      %v1206 = vpop.f32.mrf.mxu0
      %v1207 = vadd.f32 %v1087, %v1206
      %v1208 = vpop.f32.mrf.mxu0
      %v1209 = vadd.f32 %v1083, %v1208
      %v1210 = vpop.f32.mrf.mxu0
      %v1211 = vadd.f32 %v1087, %v1210
      %1212 = vmatprep.mubr.bf16.mxu0 0
      %1213 = vmatmul.mubr.bf16.gmra.mxu0 %v1055
      %v1214 = vpop.f32.mrf.mxu0
      %v1215 = vadd.f32 %v1083, %v1214
      %v1216 = vpop.f32.mrf.mxu0
      %v1217 = vadd.f32 %v1087, %v1216
      %v1218 = vpop.f32.mrf.mxu0
      %v1219 = vadd.f32 %v1083, %v1218
      %v1220 = vpop.f32.mrf.mxu0
      %v1221 = vadd.f32 %v1087, %v1220
      %1222 = vmatprep.mubr.bf16.mxu0 0
      %1223 = vmatmul.mubr.bf16.gmra.mxu0 %v1056
      %v1224 = vpop.f32.mrf.mxu0
      %v1225 = vadd.f32 %v1083, %v1224
      %v1226 = vpop.f32.mrf.mxu0
      %v1227 = vadd.f32 %v1087, %v1226
      %v1228 = vpop.f32.mrf.mxu0
      %v1229 = vadd.f32 %v1083, %v1228
      %v1230 = vpop.f32.mrf.mxu0
      %v1231 = vadd.f32 %v1087, %v1230
      %1232 = vmatprep.mubr.bf16.mxu0 0
      %1233 = vmatmul.mubr.bf16.gmra.mxu0 %v1057
      %v1234 = vpop.f32.mrf.mxu0
      %v1235 = vadd.f32 %v1083, %v1234
      %v1236 = vpop.f32.mrf.mxu0
      %v1237 = vadd.f32 %v1087, %v1236
      %v1238 = vpop.f32.mrf.mxu0
      %v1239 = vadd.f32 %v1083, %v1238
      %v1240 = vpop.f32.mrf.mxu0
      %v1241 = vadd.f32 %v1087, %v1240
      %1242 = vmatprep.mubr.bf16.mxu0 0
      %1243 = vmatmul.mubr.bf16.gmra.mxu0 %v1058
      %v1244 = vpop.f32.mrf.mxu0
      %v1245 = vadd.f32 %v1083, %v1244
      %v1246 = vpop.f32.mrf.mxu0
      %v1247 = vadd.f32 %v1087, %v1246
      %v1248 = vpop.f32.mrf.mxu0
      %v1249 = vadd.f32 %v1083, %v1248
      %v1250 = vpop.f32.mrf.mxu0
      %v1251 = vadd.f32 %v1087, %v1250
      %1252 = vmatprep.mubr.bf16.mxu0 0
      %1253 = vmatmul.mubr.bf16.gmra.mxu0 %v1059
      %v1254 = vpop.f32.mrf.mxu0
      %v1255 = vadd.f32 %v1083, %v1254
      %v1256 = vpop.f32.mrf.mxu0
      %v1257 = vadd.f32 %v1087, %v1256
      %v1258 = vpop.f32.mrf.mxu0
      %v1259 = vadd.f32 %v1083, %v1258
      %v1260 = vpop.f32.mrf.mxu0
      %v1261 = vadd.f32 %v1087, %v1260
      %1262 = vmatprep.mubr.bf16.mxu0 0
      %1263 = vmatmul.mubr.bf16.gmra.mxu0 %v1060
      %v1264 = vpop.f32.mrf.mxu0
      %v1265 = vadd.f32 %v1083, %v1264
      %v1266 = vpop.f32.mrf.mxu0
      %v1267 = vadd.f32 %v1087, %v1266
      %v1268 = vpop.f32.mrf.mxu0
      %v1269 = vadd.f32 %v1083, %v1268
      %v1270 = vpop.f32.mrf.mxu0
      %v1271 = vadd.f32 %v1087, %v1270
      %1272 = vmatprep.mubr.bf16.mxu0 0
      %1273 = vmatmul.mubr.bf16.gmra.mxu0 %v1061
      %v1274 = vpop.f32.mrf.mxu0
      %v1275 = vadd.f32 %v1083, %v1274
      %v1276 = vpop.f32.mrf.mxu0
      %v1277 = vadd.f32 %v1087, %v1276
      %v1278 = vpop.f32.mrf.mxu0
      %v1279 = vadd.f32 %v1083, %v1278
      %v1280 = vpop.f32.mrf.mxu0
      %v1281 = vadd.f32 %v1087, %v1280
      %1282 = vdwg.mxu0
      %v1283 = vxor.u32 %v1205, 2147483648
      %v1284 = vxor.u32 %v1207, 2147483648
      %v1285 = vxor.u32 %v1209, 2147483648
      %v1286 = vxor.u32 %v1211, 2147483648
      %v1287 = vxor.u32 %v1215, 2147483648
      %v1288 = vxor.u32 %v1217, 2147483648
      %v1289 = vxor.u32 %v1219, 2147483648
      %v1290 = vxor.u32 %v1221, 2147483648
      %v1291 = vxor.u32 %v1225, 2147483648
      %v1292 = vxor.u32 %v1227, 2147483648
      %v1293 = vxor.u32 %v1229, 2147483648
      %v1294 = vxor.u32 %v1231, 2147483648
      %v1295 = vxor.u32 %v1235, 2147483648
      %v1296 = vxor.u32 %v1237, 2147483648
      %v1297 = vxor.u32 %v1239, 2147483648
      %v1298 = vxor.u32 %v1241, 2147483648
      %v1299 = vxor.u32 %v1245, 2147483648
      %v1300 = vxor.u32 %v1247, 2147483648
      %v1301 = vxor.u32 %v1249, 2147483648
      %v1302 = vxor.u32 %v1251, 2147483648
      %v1303 = vxor.u32 %v1255, 2147483648
      %v1304 = vxor.u32 %v1257, 2147483648
      %v1305 = vxor.u32 %v1259, 2147483648
      %v1306 = vxor.u32 %v1261, 2147483648
      %v1307 = vxor.u32 %v1265, 2147483648
      %v1308 = vxor.u32 %v1267, 2147483648
      %v1309 = vxor.u32 %v1269, 2147483648
      %v1310 = vxor.u32 %v1271, 2147483648
      %v1311 = vxor.u32 %v1275, 2147483648
      %v1312 = vxor.u32 %v1277, 2147483648
      %v1313 = vxor.u32 %v1279, 2147483648
      %v1314 = vxor.u32 %v1281, 2147483648
      %v1315 = vmul.f32 %v1283, 1.442695
      %v1316 = vpow.pop %v1315
      %v1317 = vmul.f32 %v1284, 1.442695
      %v1318 = vpow.pop %v1317
      %v1319 = vmul.f32 %v1285, 1.442695
      %v1320 = vpow.pop %v1319
      %v1321 = vmul.f32 %v1286, 1.442695
      %v1322 = vpow.pop %v1321
      %v1323 = vmul.f32 %v1287, 1.442695
      %v1324 = vpow.pop %v1323
      %v1325 = vmul.f32 %v1288, 1.442695
      %v1326 = vpow.pop %v1325
      %v1327 = vmul.f32 %v1289, 1.442695
      %v1328 = vpow.pop %v1327
      %v1329 = vmul.f32 %v1290, 1.442695
      %v1330 = vpow.pop %v1329
      %v1331 = vmul.f32 %v1291, 1.442695
      %v1332 = vpow.pop %v1331
      %v1333 = vmul.f32 %v1292, 1.442695
      %v1334 = vpow.pop %v1333
      %v1335 = vmul.f32 %v1293, 1.442695
      %v1336 = vpow.pop %v1335
      %v1337 = vmul.f32 %v1294, 1.442695
      %v1338 = vpow.pop %v1337
      %v1339 = vmul.f32 %v1295, 1.442695
      %v1340 = vpow.pop %v1339
      %v1341 = vmul.f32 %v1296, 1.442695
      %v1342 = vpow.pop %v1341
      %v1343 = vmul.f32 %v1297, 1.442695
      %v1344 = vpow.pop %v1343
      %v1345 = vmul.f32 %v1298, 1.442695
      %v1346 = vpow.pop %v1345
      %v1347 = vmul.f32 %v1299, 1.442695
      %v1348 = vpow.pop %v1347
      %v1349 = vmul.f32 %v1300, 1.442695
      %v1350 = vpow.pop %v1349
      %v1351 = vmul.f32 %v1301, 1.442695
      %v1352 = vpow.pop %v1351
      %v1353 = vmul.f32 %v1302, 1.442695
      %v1354 = vpow.pop %v1353
      %v1355 = vmul.f32 %v1303, 1.442695
      %v1356 = vpow.pop %v1355
      %v1357 = vmul.f32 %v1304, 1.442695
      %v1358 = vpow.pop %v1357
      %v1359 = vmul.f32 %v1305, 1.442695
      %v1360 = vpow.pop %v1359
      %v1361 = vmul.f32 %v1306, 1.442695
      %v1362 = vpow.pop %v1361
      %v1363 = vmul.f32 %v1307, 1.442695
      %v1364 = vpow.pop %v1363
      %v1365 = vmul.f32 %v1308, 1.442695
      %v1366 = vpow.pop %v1365
      %v1367 = vmul.f32 %v1309, 1.442695
      %v1368 = vpow.pop %v1367
      %v1369 = vmul.f32 %v1310, 1.442695
      %v1370 = vpow.pop %v1369
      %v1371 = vmul.f32 %v1311, 1.442695
      %v1372 = vpow.pop %v1371
      %v1373 = vmul.f32 %v1312, 1.442695
      %v1374 = vpow.pop %v1373
      %v1375 = vmul.f32 %v1313, 1.442695
      %v1376 = vpow.pop %v1375
      %v1377 = vmul.f32 %v1314, 1.442695
      %v1378 = vpow.pop %v1377
      %v1379 = vadd.f32 %v1316, 1.0
      %v1380 = vadd.f32 %v1318, 1.0
      %v1381 = vadd.f32 %v1320, 1.0
      %v1382 = vadd.f32 %v1322, 1.0
      %v1383 = vadd.f32 %v1324, 1.0
      %v1384 = vadd.f32 %v1326, 1.0
      %v1385 = vadd.f32 %v1328, 1.0
      %v1386 = vadd.f32 %v1330, 1.0
      %v1387 = vadd.f32 %v1332, 1.0
      %v1388 = vadd.f32 %v1334, 1.0
      %v1389 = vadd.f32 %v1336, 1.0
      %v1390 = vadd.f32 %v1338, 1.0
      %v1391 = vadd.f32 %v1340, 1.0
      %v1392 = vadd.f32 %v1342, 1.0
      %v1393 = vadd.f32 %v1344, 1.0
      %v1394 = vadd.f32 %v1346, 1.0
      %v1395 = vadd.f32 %v1348, 1.0
      %v1396 = vadd.f32 %v1350, 1.0
      %v1397 = vadd.f32 %v1352, 1.0
      %v1398 = vadd.f32 %v1354, 1.0
      %v1399 = vadd.f32 %v1356, 1.0
      %v1400 = vadd.f32 %v1358, 1.0
      %v1401 = vadd.f32 %v1360, 1.0
      %v1402 = vadd.f32 %v1362, 1.0
      %v1403 = vadd.f32 %v1364, 1.0
      %v1404 = vadd.f32 %v1366, 1.0
      %v1405 = vadd.f32 %v1368, 1.0
      %v1406 = vadd.f32 %v1370, 1.0
      %v1407 = vadd.f32 %v1372, 1.0
      %v1408 = vadd.f32 %v1374, 1.0
      %v1409 = vadd.f32 %v1376, 1.0
      %v1410 = vadd.f32 %v1378, 1.0
      %v1411 = vrcp.pop %v1379
      %v1412 = vmul.f32 1.0, %v1411
      %v1413 = vrcp.pop %v1380
      %v1414 = vmul.f32 1.0, %v1413
      %v1415 = vrcp.pop %v1381
      %v1416 = vmul.f32 1.0, %v1415
      %v1417 = vrcp.pop %v1382
      %v1418 = vmul.f32 1.0, %v1417
      %v1419 = vrcp.pop %v1383
      %v1420 = vmul.f32 1.0, %v1419
      %v1421 = vrcp.pop %v1384
      %v1422 = vmul.f32 1.0, %v1421
      %v1423 = vrcp.pop %v1385
      %v1424 = vmul.f32 1.0, %v1423
      %v1425 = vrcp.pop %v1386
      %v1426 = vmul.f32 1.0, %v1425
      %v1427 = vrcp.pop %v1387
      %v1428 = vmul.f32 1.0, %v1427
      %v1429 = vrcp.pop %v1388
      %v1430 = vmul.f32 1.0, %v1429
      %v1431 = vrcp.pop %v1389
      %v1432 = vmul.f32 1.0, %v1431
      %v1433 = vrcp.pop %v1390
      %v1434 = vmul.f32 1.0, %v1433
      %v1435 = vrcp.pop %v1391
      %v1436 = vmul.f32 1.0, %v1435
      %v1437 = vrcp.pop %v1392
      %v1438 = vmul.f32 1.0, %v1437
      %v1439 = vrcp.pop %v1393
      %v1440 = vmul.f32 1.0, %v1439
      %v1441 = vrcp.pop %v1394
      %v1442 = vmul.f32 1.0, %v1441
      %v1443 = vrcp.pop %v1395
      %v1444 = vmul.f32 1.0, %v1443
      %v1445 = vrcp.pop %v1396
      %v1446 = vmul.f32 1.0, %v1445
      %v1447 = vrcp.pop %v1397
      %v1448 = vmul.f32 1.0, %v1447
      %v1449 = vrcp.pop %v1398
      %v1450 = vmul.f32 1.0, %v1449
      %v1451 = vrcp.pop %v1399
      %v1452 = vmul.f32 1.0, %v1451
      %v1453 = vrcp.pop %v1400
      %v1454 = vmul.f32 1.0, %v1453
      %v1455 = vrcp.pop %v1401
      %v1456 = vmul.f32 1.0, %v1455
      %v1457 = vrcp.pop %v1402
      %v1458 = vmul.f32 1.0, %v1457
      %v1459 = vrcp.pop %v1403
      %v1460 = vmul.f32 1.0, %v1459
      %v1461 = vrcp.pop %v1404
      %v1462 = vmul.f32 1.0, %v1461
      %v1463 = vrcp.pop %v1405
      %v1464 = vmul.f32 1.0, %v1463
      %v1465 = vrcp.pop %v1406
      %v1466 = vmul.f32 1.0, %v1465
      %v1467 = vrcp.pop %v1407
      %v1468 = vmul.f32 1.0, %v1467
      %v1469 = vrcp.pop %v1408
      %v1470 = vmul.f32 1.0, %v1469
      %v1471 = vrcp.pop %v1409
      %v1472 = vmul.f32 1.0, %v1471
      %v1473 = vrcp.pop %v1410
      %v1474 = vmul.f32 1.0, %v1473
      %1475 = vst [vmem:[%s339] sm:$0xff] %v1412
      %1476 = vst [vmem:[%s339 + $0x8] sm:$0xff] %v1414
      %1477 = vst [vmem:[%s339 + $0x10] sm:$0xff] %v1416
      %1478 = vst [vmem:[%s339 + $0x18] sm:$0xff] %v1418
      %1479 = vst [vmem:[%s339 + $0x20] sm:$0xff] %v1420
      %1480 = vst [vmem:[%s339 + $0x28] sm:$0xff] %v1422
      %1481 = vst [vmem:[%s339 + $0x30] sm:$0xff] %v1424
      %1482 = vst [vmem:[%s339 + $0x38] sm:$0xff] %v1426
      %1483 = vst [vmem:[%s339 + $0x40] sm:$0xff] %v1428
      %1484 = vst [vmem:[%s339 + $0x48] sm:$0xff] %v1430
      %1485 = vst [vmem:[%s339 + $0x50] sm:$0xff] %v1432
      %1486 = vst [vmem:[%s339 + $0x58] sm:$0xff] %v1434
      %1487 = vst [vmem:[%s339 + $0x60] sm:$0xff] %v1436
      %1488 = vst [vmem:[%s339 + $0x68] sm:$0xff] %v1438
      %1489 = vst [vmem:[%s339 + $0x70] sm:$0xff] %v1440
      %1490 = vst [vmem:[%s339 + $0x78] sm:$0xff] %v1442
      %1491 = vst [vmem:[%s339 + $0x80] sm:$0xff] %v1444
      %1492 = vst [vmem:[%s339 + $0x88] sm:$0xff] %v1446
      %1493 = vst [vmem:[%s339 + $0x90] sm:$0xff] %v1448
      %1494 = vst [vmem:[%s339 + $0x98] sm:$0xff] %v1450
      %1495 = vst [vmem:[%s339 + $0xa0] sm:$0xff] %v1452
      %1496 = vst [vmem:[%s339 + $0xa8] sm:$0xff] %v1454
      %1497 = vst [vmem:[%s339 + $0xb0] sm:$0xff] %v1456
      %1498 = vst [vmem:[%s339 + $0xb8] sm:$0xff] %v1458
      %1499 = vst [vmem:[%s339 + $0xc0] sm:$0xff] %v1460
      %1500 = vst [vmem:[%s339 + $0xc8] sm:$0xff] %v1462
      %1501 = vst [vmem:[%s339 + $0xd0] sm:$0xff] %v1464
      %1502 = vst [vmem:[%s339 + $0xd8] sm:$0xff] %v1466
      %1503 = vst [vmem:[%s339 + $0xe0] sm:$0xff] %v1468
      %1504 = vst [vmem:[%s339 + $0xe8] sm:$0xff] %v1470
      %1505 = vst [vmem:[%s339 + $0xf0] sm:$0xff] %v1472
      %1506 = vst [vmem:[%s339 + $0xf8] sm:$0xff] %v1474
      %s1507 = smul.u32 16, %s20
      %p1508 = scmp.lt.s32.totalorder %s1507, 31
      %s1509 = scalar_select %p1508, %s1507, 31
      %s1510 = smul.addr %s1509, 2
      %s1511 = smul.addr %s1510, 8
      %s1512 = scalar_lea.vmem %s9, %s1511
      // Predicated region
      $region57: #{autoencoder_forward.1} parent=55 // pred_check
        %p1513 = pneg %p232
      $region58: #{autoencoder_forward.1} parent=55 // pred_check_branch
        %1515 = sbr.rel (%p1513) target = $region60
      $region59: #{autoencoder_forward.1} parent=55 // pred_region
        %s1516 = smul.u32 16, %s20
      $region60: #{autoencoder_forward.1} parent=55 // pred_fallthru
        _
    $region56: #{autoencoder_forward.1} parent=5 // pred_fallthru
      _
    %p1517 = scmp.le.s32.totalorder 2, %s15
    // Predicated region
    $region61: #{autoencoder_forward.1} parent=5 // pred_check
      %p1518 = pneg %p1517
    $region62: #{autoencoder_forward.1} parent=5 // pred_check_branch
      %1520 = sbr.rel (%p1518) target = $region64
    $region63: #{autoencoder_forward.1} parent=5 // pred_region
      %s1521 = ssub.s32 %s15, 2
      // Predicated region
      $region65: #{autoencoder_forward.1} parent=63 // pred_check
        %p1522 = pneg %p238
      $region66: #{autoencoder_forward.1} parent=63 // pred_check_branch
        %1524 = sbr.rel (%p1522) target = $region68
      $region67: #{autoencoder_forward.1} parent=63 // pred_region
        %s1525 = smul.u32 16, %s21
        %p1526 = scmp.lt.s32.totalorder %s1525, 31
        %s1527 = scalar_select %p1526, %s1525, 31
        %s1528 = smul.addr %s1527, 2
        %s1529 = smul.addr %s1528, 8
        %s1530 = scalar_lea.vmem %s9, %s1529
      $region68: #{autoencoder_forward.1} parent=63 // pred_fallthru
        _
    $region64: #{autoencoder_forward.1} parent=5 // pred_fallthru
      _
  $region6: #{autoencoder_forward.1} parent=0 // loop_footer
    %s19 = sadd.s32 1, %s15
  $region7: #{autoencoder_forward.1} parent=0 // loop_footer_branch
    %14 = sbr.rel target = $region3
  $region8: #{autoencoder_forward.1} parent=0 // loop_exit
    _

</llo_original>
